<compile_context>
chip_gen: v5e
topology: v5e:2x2
jax: 0.10.0
libtpu: 0.0.40
codegen_flags: <defaults>
</compile_context>

<pallas_src>
import math
from functools import partial

import jax
import jax.numpy as jnp
from jax import lax
from jax.experimental import pallas as pl
from jax.experimental.pallas import tpu as pltpu  # noqa: F401  (TPU backend)

# ------------- small config (forward-consistent with the PyTorch module) ----
B_SZ       = 2      # batch
T_SEQ      = 16     # sequence length
N_EMBD     = 32     # C
N_HEAD     = 4      # H  (head_dim = 8)
N_LAYER    = 4
N_STAGES   = 4      # layers_per_stage = 1
CUR_STAGE  = 1      # IncrementalGPT starts at stage 1 -> 1 active layer
VOCAB      = 128    # lane-dense vocab (multiple of 128)
BLOCK_SIZE = 32     # positional table size (>= T_SEQ)
LN_EPS     = 1e-5
NEG_INF    = -1e30


# ----------------------------- in-kernel helpers ----------------------------
def _layernorm(v, w, b):
    # biased variance, eps inside rsqrt  (matches torch.nn.LayerNorm)
    mu = jnp.mean(v, axis=-1, keepdims=True)
    var = jnp.mean(jnp.square(v - mu), axis=-1, keepdims=True)
    return (v - mu) * lax.rsqrt(var + LN_EPS) * w + b


def _gelu_tanh(x):
    # matches nn.GELU(approximate='tanh'); tanh goes to the EUP slot
    c = math.sqrt(2.0 / math.pi)
    return 0.5 * x * (1.0 + jnp.tanh(c * (x + 0.044715 * x * x * x)))


def _bdot(a, b):
    """bf16 x bf16 -> f32 MXU matmul."""
    return jnp.dot(a.astype(jnp.bfloat16), b.astype(jnp.bfloat16),
                   preferred_element_type=jnp.float32)


def _bdot_t(a, b):
    """bf16 a @ b.T (contract last dims of both) -> f32."""
    return lax.dot_general(a.astype(jnp.bfloat16), b.astype(jnp.bfloat16),
                           (((1,), (1,)), ((), ())),
                           preferred_element_type=jnp.float32)


# --------------------------- fused full-forward kernel ----------------------
def fused_gpt_kernel(x_ref, bias_ref,
                     ln1w_ref, ln1b_ref,
                     wq_ref, bq_ref, wk_ref, bk_ref, wv_ref, bv_ref,
                     wpr_ref, bpr_ref,
                     ln2w_ref, ln2b_ref,
                     wfc_ref, bfc_ref, wp2_ref, bp2_ref,
                     lnfw_ref, lnfb_ref, wlm_ref,
                     logits_ref,
                     *, num_layers, n_head):
    x = x_ref[...]                     # (M, C) f32,  M = B*T (flattened batch)
    attn_bias = bias_ref[...]          # (M, M) f32: 0 = allowed, -1e30 = masked
    M, C = x.shape

    for ll in range(num_layers):                         # static unroll (layers)
        # ------------------------- attention -------------------------
        h = _layernorm(x, ln1w_ref[ll], ln1b_ref[ll])
        h_bf = h.astype(jnp.bfloat16)
        y = jnp.zeros((M, C), jnp.float32)               # per-head accumulator
        for hh in range(n_head):                         # static unroll (heads)
            i = ll * n_head + hh
            # per-head projections (weights pre-split & pre-transposed;
            # the 1/sqrt(D) score scale is already folded into wq/bq)
            qh = _bdot(h_bf, wq_ref[i]) + bq_ref[i]      # (M, D) f32
            kh = _bdot(h_bf, wk_ref[i]) + bk_ref[i]
            vh = _bdot(h_bf, wv_ref[i]) + bv_ref[i]
            s = _bdot_t(qh, kh) + attn_bias              # (M, M) scores + mask
            s = s - jnp.max(s, axis=-1, keepdims=True)
            p = jnp.exp(s)                               # unnormalized softmax
            denom = jnp.sum(p, axis=-1, keepdims=True)   # (M, 1)
            o = _bdot(p, vh)                             # (M, D) unnormalized
            o = o * pl.reciprocal(denom, approx=True)    # normalize post-PV (EUP)
            y = y + _bdot(o, wpr_ref[i])                 # head slice of c_proj
        x = x + y + bpr_ref[ll]                          # residual + proj bias

        # --------------------------- MLP ------------------------------
        h2 = _layernorm(x, ln2w_ref[ll], ln2b_ref[ll])
        u = _bdot(h2, wfc_ref[ll]) + bfc_ref[ll]         # (M, 4C) f32
        u = _gelu_tanh(u)
        x = x + _bdot(u, wp2_ref[ll]) + bp2_ref[ll]

    # ---------------------- ln_f + tied lm_head -----------------------
    hf = _layernorm(x, lnfw_ref[...], lnfb_ref[...])
    logits_ref[...] = _bdot(hf, wlm_ref[...])            # (M, V) lane-dense store


def run_fused_forward(x_flat, attn_bias, p):
    """One pallas_call; everything (weights + activations) lives in VMEM."""
    M, _ = x_flat.shape
    V = p["wlm"].shape[1]
    L = p["ln1w"].shape[0]
    H = p["wq"].shape[0] // L
    kernel = partial(fused_gpt_kernel, num_layers=L, n_head=H)
    return pl.pallas_call(
        kernel,
        out_shape=jax.ShapeDtypeStruct((M, V), jnp.float32),
        # no grid / no BlockSpecs: whole arrays are mapped into VMEM once
        # (total params + activations << 1 MiB -> fits v5e/v6e/v7x trivially)
    )(x_flat, attn_bias,
      p["ln1w"], p["ln1b"],
      p["wq"], p["bq"], p["wk"], p["bk"], p["wv"], p["bv"],
      p["wpr"], p["bpr"],
      p["ln2w"], p["ln2b"],
      p["wfc"], p["bfc"], p["wp2"], p["bp2"],
      p["lnfw"], p["lnfb"], p["wlm"])


# ------------------- parameter init (mirrors _init_weights) -----------------
def init_params(key):
    keys = iter(jax.random.split(key, 2 + 4 * N_LAYER))
    std = 0.02
    proj_std = 0.02 * (2 * N_LAYER) ** (-0.5)   # NANOGPT_SCALE_INIT
    C = N_EMBD

    wte = std * jax.random.normal(next(keys), (VOCAB, C), jnp.float32)
    wpe = std * jax.random.normal(next(keys), (BLOCK_SIZE, C), jnp.float32)

    blocks = []
    for _ in range(N_LAYER):
        blocks.append(dict(
            ln1w=jnp.ones((C,), jnp.float32), ln1b=jnp.zeros((C,), jnp.float32),
            # torch Linear weight layout: (out, in)
            w_attn=std * jax.random.normal(next(keys), (3 * C, C), jnp.float32),
            b_attn=jnp.zeros((3 * C,), jnp.float32),
            w_proj=proj_std * jax.random.normal(next(keys), (C, C), jnp.float32),
            b_proj=jnp.zeros((C,), jnp.float32),
            ln2w=jnp.ones((C,), jnp.float32), ln2b=jnp.zeros((C,), jnp.float32),
            w_fc=std * jax.random.normal(next(keys), (4 * C, C), jnp.float32),
            b_fc=jnp.zeros((4 * C,), jnp.float32),
            w_proj2=proj_std * jax.random.normal(next(keys), (C, 4 * C), jnp.float32),
            b_proj2=jnp.zeros((C,), jnp.float32),
        ))
    return dict(wte=wte, wpe=wpe, blocks=blocks,
                lnfw=jnp.ones((C,), jnp.float32),
                lnfb=jnp.zeros((C,), jnp.float32))


def pack_params(params, current_stage):
    """Split / transpose / cast torch-layout params into the kernel layout."""
    layers_per_stage = N_LAYER // N_STAGES
    L = current_stage * layers_per_stage            # active layers this stage
    C, H = N_EMBD, N_HEAD
    D = C // H
    qk_scale = 1.0 / math.sqrt(D)

    names = ("ln1w", "ln1b", "wq", "bq", "wk", "bk", "wv", "bv", "wpr", "bpr",
             "ln2w", "ln2b", "wfc", "bfc", "wp2", "bp2")
    acc = {n: [] for n in names}

    for li in range(L):
        blk = params["blocks"][li]
        acc["ln1w"].append(blk["ln1w"].reshape(1, C))
        acc["ln1b"].append(blk["ln1b"].reshape(1, C))
        acc["ln2w"].append(blk["ln2w"].reshape(1, C))
        acc["ln2b"].append(blk["ln2b"].reshape(1, C))
        acc["bpr"].append(blk["b_proj"].reshape(1, C))
        acc["wfc"].append(blk["w_fc"].T)                     # (C, 4C)
        acc["bfc"].append(blk["b_fc"].reshape(1, 4 * C))
        acc["wp2"].append(blk["w_proj2"].T)                  # (4C, C)
        acc["bp2"].append(blk["b_proj2"].reshape(1, C))

        W_attn, b_attn = blk["w_attn"], blk["b_attn"]        # (3C, C), (3C,)
        W_proj = blk["w_proj"]                               # (C, C)
        for hh in range(H):
            q_sl = slice(hh * D, (hh + 1) * D)
            k_sl = slice(C + hh * D, C + (hh + 1) * D)
            v_sl = slice(2 * C + hh * D, 2 * C + (hh + 1) * D)
            # torch Linear weight is (out, in); kernel wants (in, out)
            acc["wq"].append(W_attn[q_sl, :].T * qk_scale)   # fold 1/sqrt(D)
            acc["bq"].append(b_attn[q_sl].reshape(1, D) * qk_scale)
            acc["wk"].append(W_attn[k_sl, :].T)
            acc["bk"].append(b_attn[k_sl].reshape(1, D))
            acc["wv"].append(W_attn[v_sl, :].T)
            acc["bv"].append(b_attn[v_sl].reshape(1, D))
            acc["wpr"].append(W_proj[:, q_sl].T)             # (D, C) head slice

    f32 = lambda lst: jnp.stack(lst).astype(jnp.float32)
    bf16 = lambda lst: jnp.stack(lst).astype(jnp.bfloat16)
    return dict(
        ln1w=f32(acc["ln1w"]), ln1b=f32(acc["ln1b"]),
        wq=bf16(acc["wq"]), bq=f32(acc["bq"]),
        wk=bf16(acc["wk"]), bk=f32(acc["bk"]),
        wv=bf16(acc["wv"]), bv=f32(acc["bv"]),
        wpr=bf16(acc["wpr"]), bpr=f32(acc["bpr"]),
        ln2w=f32(acc["ln2w"]), ln2b=f32(acc["ln2b"]),
        wfc=bf16(acc["wfc"]), bfc=f32(acc["bfc"]),
        wp2=bf16(acc["wp2"]), bp2=f32(acc["bp2"]),
        lnfw=params["lnfw"].reshape(1, C).astype(jnp.float32),
        lnfb=params["lnfb"].reshape(1, C).astype(jnp.float32),
        # weight tying: lm_head weight == wte; pre-transposed (C, V), bf16
        wlm=params["wte"].T.astype(jnp.bfloat16),
    )


# --------- full forward (IncrementalGPT.forward with targets=None) ----------
@jax.jit
def incremental_gpt_forward(idx, wte, wpe, packed):
    Bb, T = idx.shape
    assert T <= BLOCK_SIZE
    C = wte.shape[1]

    # embedding gather + positional add (plain-JAX glue; not a bottleneck)
    tok_emb = jnp.take(wte, idx, axis=0)                 # (B, T, C)
    pos_emb = wpe[:T]                                    # (T, C)
    x = (tok_emb + pos_emb).astype(jnp.float32).reshape(Bb * T, C)

    # block-diagonal causal additive bias over the flattened (B*T) token axis
    M = Bb * T
    r = jnp.arange(M, dtype=jnp.int32)
    same_seq = (r[:, None] // T) == (r[None, :] // T)
    causal = r[None, :] <= r[:, None]
    attn_bias = jnp.where(same_seq & causal, 0.0, NEG_INF).astype(jnp.float32)

    logits = run_fused_forward(x, attn_bias, packed)     # (M, V)
    # TODO(synk): targets / cross-entropy loss branch not exercised (targets=None).
    return logits.reshape(Bb, T, -1)


if __name__ == "__main__":
    key = jax.random.PRNGKey(0)
    pkey, ikey = jax.random.split(key)
    params = init_params(pkey)
    packed = pack_params(params, CUR_STAGE)   # ~ IncrementalGPT.set_stage(1)
    idx = jax.random.randint(ikey, (B_SZ, T_SEQ), 0, VOCAB, dtype=jnp.int32)

    logits = incremental_gpt_forward(idx, params["wte"], params["wpe"], packed)
    jax.block_until_ready(logits)
    assert logits.shape == (B_SZ, T_SEQ, VOCAB)
    print("KERNEL_OK")
</pallas_src>

<mosaic_0001>
module attributes {stable_mosaic.version = 11 : i64} {
  func.func @fused_gpt_kernel(%arg0: memref<32x32xf32, #tpu.memory_space<vmem>>, %arg1: memref<32x32xf32, #tpu.memory_space<vmem>>, %arg2: memref<1x1x32xf32, #tpu.memory_space<vmem>>, %arg3: memref<1x1x32xf32, #tpu.memory_space<vmem>>, %arg4: memref<4x32x8xbf16, #tpu.memory_space<vmem>>, %arg5: memref<4x1x8xf32, #tpu.memory_space<vmem>>, %arg6: memref<4x32x8xbf16, #tpu.memory_space<vmem>>, %arg7: memref<4x1x8xf32, #tpu.memory_space<vmem>>, %arg8: memref<4x32x8xbf16, #tpu.memory_space<vmem>>, %arg9: memref<4x1x8xf32, #tpu.memory_space<vmem>>, %arg10: memref<4x8x32xbf16, #tpu.memory_space<vmem>>, %arg11: memref<1x1x32xf32, #tpu.memory_space<vmem>>, %arg12: memref<1x1x32xf32, #tpu.memory_space<vmem>>, %arg13: memref<1x1x32xf32, #tpu.memory_space<vmem>>, %arg14: memref<1x32x128xbf16, #tpu.memory_space<vmem>>, %arg15: memref<1x1x128xf32, #tpu.memory_space<vmem>>, %arg16: memref<1x128x32xbf16, #tpu.memory_space<vmem>>, %arg17: memref<1x1x32xf32, #tpu.memory_space<vmem>>, %arg18: memref<1x32xf32, #tpu.memory_space<vmem>>, %arg19: memref<1x32xf32, #tpu.memory_space<vmem>>, %arg20: memref<32x128xbf16, #tpu.memory_space<vmem>>, %arg21: memref<32x128xf32, #tpu.memory_space<vmem>>) attributes {dimension_semantics = [], scalar_prefetch = 0 : i64, scratch_operands = 0 : i64, tpu.core_type = #tpu.core_type<tc>} {
    %c0 = arith.constant 0 : index
    %c0_0 = arith.constant 0 : index
    %0 = vector.load %arg0[%c0, %c0_0] : memref<32x32xf32, #tpu.memory_space<vmem>>, vector<32x32xf32>
    %c0_1 = arith.constant 0 : index
    %c0_2 = arith.constant 0 : index
    %1 = vector.load %arg1[%c0_1, %c0_2] : memref<32x32xf32, #tpu.memory_space<vmem>>, vector<32x32xf32>
    %c0_3 = arith.constant 0 : index
    %c0_4 = arith.constant 0 : index
    %c0_5 = arith.constant 0 : index
    %2 = vector.load %arg2[%c0_3, %c0_4, %c0_5] : memref<1x1x32xf32, #tpu.memory_space<vmem>>, vector<1x1x32xf32>
    %3 = vector.shape_cast %2 : vector<1x1x32xf32> to vector<1x32xf32>
    %c0_6 = arith.constant 0 : index
    %c0_7 = arith.constant 0 : index
    %c0_8 = arith.constant 0 : index
    %4 = vector.load %arg3[%c0_6, %c0_7, %c0_8] : memref<1x1x32xf32, #tpu.memory_space<vmem>>, vector<1x1x32xf32>
    %5 = vector.shape_cast %4 : vector<1x1x32xf32> to vector<1x32xf32>
    %cst = arith.constant dense<0.000000e+00> : vector<32xf32>
    %6 = vector.multi_reduction <add>, %0, %cst [1] : vector<32x32xf32> to vector<32xf32>
    %7 = vector.shape_cast %6 : vector<32xf32> to vector<32x1xf32>
    %cst_9 = arith.constant 3.200000e+01 : f32
    %8 = vector.broadcast %cst_9 : f32 to vector<32x1xf32>
    %9 = arith.divf %7, %8 : vector<32x1xf32>
    %10 = vector.broadcast %9 : vector<32x1xf32> to vector<32x32xf32>
    %11 = arith.subf %0, %10 : vector<32x32xf32>
    %12 = arith.mulf %11, %11 : vector<32x32xf32>
    %cst_10 = arith.constant dense<0.000000e+00> : vector<32xf32>
    %13 = vector.multi_reduction <add>, %12, %cst_10 [1] : vector<32x32xf32> to vector<32xf32>
    %14 = vector.shape_cast %13 : vector<32xf32> to vector<32x1xf32>
    %cst_11 = arith.constant 3.200000e+01 : f32
    %15 = vector.broadcast %cst_11 : f32 to vector<32x1xf32>
    %16 = arith.divf %14, %15 : vector<32x1xf32>
    %17 = vector.broadcast %9 : vector<32x1xf32> to vector<32x32xf32>
    %18 = arith.subf %0, %17 : vector<32x32xf32>
    %cst_12 = arith.constant 9.99999974E-6 : f32
    %19 = vector.broadcast %cst_12 : f32 to vector<32x1xf32>
    %20 = arith.addf %16, %19 : vector<32x1xf32>
    %21 = math.rsqrt %20 : vector<32x1xf32>
    %22 = vector.broadcast %21 : vector<32x1xf32> to vector<32x32xf32>
    %23 = arith.mulf %18, %22 : vector<32x32xf32>
    %24 = vector.broadcast %3 : vector<1x32xf32> to vector<32x32xf32>
    %25 = arith.mulf %23, %24 : vector<32x32xf32>
    %26 = vector.broadcast %5 : vector<1x32xf32> to vector<32x32xf32>
    %27 = arith.addf %25, %26 : vector<32x32xf32>
    %28 = arith.truncf %27 : vector<32x32xf32> to vector<32x32xbf16>
    %cst_13 = arith.constant 0.000000e+00 : f32
    %29 = vector.broadcast %cst_13 : f32 to vector<32x32xf32>
    %c0_14 = arith.constant 0 : index
    %c0_15 = arith.constant 0 : index
    %c0_16 = arith.constant 0 : index
    %30 = vector.load %arg4[%c0_14, %c0_15, %c0_16] : memref<4x32x8xbf16, #tpu.memory_space<vmem>>, vector<1x32x8xbf16>
    %31 = vector.shape_cast %30 : vector<1x32x8xbf16> to vector<32x8xbf16>
    %cst_17 = arith.constant dense<0.000000e+00> : vector<32x8xf32>
    %32 = tpu.matmul %28, %31, %cst_17 {dimension_numbers = #tpu.dot_dimension_numbers<[1], [0], [0], [1], [0, 0, 1, 1], [], []>} : vector<32x32xbf16>, vector<32x8xbf16>, vector<32x8xf32> -> vector<32x8xf32>
    %c0_18 = arith.constant 0 : index
    %c0_19 = arith.constant 0 : index
    %c0_20 = arith.constant 0 : index
    %33 = vector.load %arg5[%c0_18, %c0_19, %c0_20] : memref<4x1x8xf32, #tpu.memory_space<vmem>>, vector<1x1x8xf32>
    %34 = vector.shape_cast %33 : vector<1x1x8xf32> to vector<1x8xf32>
    %35 = vector.broadcast %34 : vector<1x8xf32> to vector<32x8xf32>
    %36 = arith.addf %32, %35 : vector<32x8xf32>
    %c0_21 = arith.constant 0 : index
    %c0_22 = arith.constant 0 : index
    %c0_23 = arith.constant 0 : index
    %37 = vector.load %arg6[%c0_21, %c0_22, %c0_23] : memref<4x32x8xbf16, #tpu.memory_space<vmem>>, vector<1x32x8xbf16>
    %38 = vector.shape_cast %37 : vector<1x32x8xbf16> to vector<32x8xbf16>
    %cst_24 = arith.constant dense<0.000000e+00> : vector<32x8xf32>
    %39 = tpu.matmul %28, %38, %cst_24 {dimension_numbers = #tpu.dot_dimension_numbers<[1], [0], [0], [1], [0, 0, 1, 1], [], []>} : vector<32x32xbf16>, vector<32x8xbf16>, vector<32x8xf32> -> vector<32x8xf32>
    %c0_25 = arith.constant 0 : index
    %c0_26 = arith.constant 0 : index
    %c0_27 = arith.constant 0 : index
    %40 = vector.load %arg7[%c0_25, %c0_26, %c0_27] : memref<4x1x8xf32, #tpu.memory_space<vmem>>, vector<1x1x8xf32>
    %41 = vector.shape_cast %40 : vector<1x1x8xf32> to vector<1x8xf32>
    %42 = vector.broadcast %41 : vector<1x8xf32> to vector<32x8xf32>
    %43 = arith.addf %39, %42 : vector<32x8xf32>
    %c0_28 = arith.constant 0 : index
    %c0_29 = arith.constant 0 : index
    %c0_30 = arith.constant 0 : index
    %44 = vector.load %arg8[%c0_28, %c0_29, %c0_30] : memref<4x32x8xbf16, #tpu.memory_space<vmem>>, vector<1x32x8xbf16>
    %45 = vector.shape_cast %44 : vector<1x32x8xbf16> to vector<32x8xbf16>
    %cst_31 = arith.constant dense<0.000000e+00> : vector<32x8xf32>
    %46 = tpu.matmul %28, %45, %cst_31 {dimension_numbers = #tpu.dot_dimension_numbers<[1], [0], [0], [1], [0, 0, 1, 1], [], []>} : vector<32x32xbf16>, vector<32x8xbf16>, vector<32x8xf32> -> vector<32x8xf32>
    %c0_32 = arith.constant 0 : index
    %c0_33 = arith.constant 0 : index
    %c0_34 = arith.constant 0 : index
    %47 = vector.load %arg9[%c0_32, %c0_33, %c0_34] : memref<4x1x8xf32, #tpu.memory_space<vmem>>, vector<1x1x8xf32>
    %48 = vector.shape_cast %47 : vector<1x1x8xf32> to vector<1x8xf32>
    %49 = vector.broadcast %48 : vector<1x8xf32> to vector<32x8xf32>
    %50 = arith.addf %46, %49 : vector<32x8xf32>
    %51 = arith.truncf %36 : vector<32x8xf32> to vector<32x8xbf16>
    %52 = arith.truncf %43 : vector<32x8xf32> to vector<32x8xbf16>
    %cst_35 = arith.constant dense<0.000000e+00> : vector<32x32xf32>
    %53 = tpu.matmul %51, %52, %cst_35 {dimension_numbers = #tpu.dot_dimension_numbers<[1], [1], [0], [0], [0, 0, 1, 0], [], []>} : vector<32x8xbf16>, vector<32x8xbf16>, vector<32x32xf32> -> vector<32x32xf32>
    %54 = arith.addf %53, %1 : vector<32x32xf32>
    %cst_36 = arith.constant dense<0xFF800000> : vector<32xf32>
    %55 = vector.multi_reduction <maximumf>, %54, %cst_36 [1] : vector<32x32xf32> to vector<32xf32>
    %56 = vector.shape_cast %55 : vector<32xf32> to vector<32x1xf32>
    %57 = vector.broadcast %56 : vector<32x1xf32> to vector<32x32xf32>
    %58 = arith.subf %54, %57 : vector<32x32xf32>
    %59 = math.exp %58 : vector<32x32xf32>
    %cst_37 = arith.constant dense<0.000000e+00> : vector<32xf32>
    %60 = vector.multi_reduction <add>, %59, %cst_37 [1] : vector<32x32xf32> to vector<32xf32>
    %61 = vector.shape_cast %60 : vector<32xf32> to vector<32x1xf32>
    %62 = arith.truncf %59 : vector<32x32xf32> to vector<32x32xbf16>
    %63 = arith.truncf %50 : vector<32x8xf32> to vector<32x8xbf16>
    %cst_38 = arith.constant dense<0.000000e+00> : vector<32x8xf32>
    %64 = tpu.matmul %62, %63, %cst_38 {dimension_numbers = #tpu.dot_dimension_numbers<[1], [0], [0], [1], [0, 0, 1, 1], [], []>} : vector<32x32xbf16>, vector<32x8xbf16>, vector<32x8xf32> -> vector<32x8xf32>
    %65 = tpu.reciprocal %61 {approx = true} : vector<32x1xf32> -> vector<32x1xf32>
    %66 = vector.broadcast %65 : vector<32x1xf32> to vector<32x8xf32>
    %67 = arith.mulf %64, %66 : vector<32x8xf32>
    %c0_39 = arith.constant 0 : index
    %c0_40 = arith.constant 0 : index
    %c0_41 = arith.constant 0 : index
    %68 = vector.load %arg10[%c0_39, %c0_40, %c0_41] : memref<4x8x32xbf16, #tpu.memory_space<vmem>>, vector<1x8x32xbf16>
    %69 = vector.shape_cast %68 : vector<1x8x32xbf16> to vector<8x32xbf16>
    %70 = arith.truncf %67 : vector<32x8xf32> to vector<32x8xbf16>
    %cst_42 = arith.constant dense<0.000000e+00> : vector<32x32xf32>
    %71 = tpu.matmul %70, %69, %cst_42 {dimension_numbers = #tpu.dot_dimension_numbers<[1], [0], [0], [1], [0, 0, 1, 1], [], []>} : vector<32x8xbf16>, vector<8x32xbf16>, vector<32x32xf32> -> vector<32x32xf32>
    %72 = arith.addf %29, %71 : vector<32x32xf32>
    %c1 = arith.constant 1 : index
    %c0_43 = arith.constant 0 : index
    %c0_44 = arith.constant 0 : index
    %73 = vector.load %arg4[%c1, %c0_43, %c0_44] : memref<4x32x8xbf16, #tpu.memory_space<vmem>>, vector<1x32x8xbf16>
    %74 = vector.shape_cast %73 : vector<1x32x8xbf16> to vector<32x8xbf16>
    %cst_45 = arith.constant dense<0.000000e+00> : vector<32x8xf32>
    %75 = tpu.matmul %28, %74, %cst_45 {dimension_numbers = #tpu.dot_dimension_numbers<[1], [0], [0], [1], [0, 0, 1, 1], [], []>} : vector<32x32xbf16>, vector<32x8xbf16>, vector<32x8xf32> -> vector<32x8xf32>
    %c1_46 = arith.constant 1 : index
    %c0_47 = arith.constant 0 : index
    %c0_48 = arith.constant 0 : index
    %76 = vector.load %arg5[%c1_46, %c0_47, %c0_48] : memref<4x1x8xf32, #tpu.memory_space<vmem>>, vector<1x1x8xf32>
    %77 = vector.shape_cast %76 : vector<1x1x8xf32> to vector<1x8xf32>
    %78 = vector.broadcast %77 : vector<1x8xf32> to vector<32x8xf32>
    %79 = arith.addf %75, %78 : vector<32x8xf32>
    %c1_49 = arith.constant 1 : index
    %c0_50 = arith.constant 0 : index
    %c0_51 = arith.constant 0 : index
    %80 = vector.load %arg6[%c1_49, %c0_50, %c0_51] : memref<4x32x8xbf16, #tpu.memory_space<vmem>>, vector<1x32x8xbf16>
    %81 = vector.shape_cast %80 : vector<1x32x8xbf16> to vector<32x8xbf16>
    %cst_52 = arith.constant dense<0.000000e+00> : vector<32x8xf32>
    %82 = tpu.matmul %28, %81, %cst_52 {dimension_numbers = #tpu.dot_dimension_numbers<[1], [0], [0], [1], [0, 0, 1, 1], [], []>} : vector<32x32xbf16>, vector<32x8xbf16>, vector<32x8xf32> -> vector<32x8xf32>
    %c1_53 = arith.constant 1 : index
    %c0_54 = arith.constant 0 : index
    %c0_55 = arith.constant 0 : index
    %83 = vector.load %arg7[%c1_53, %c0_54, %c0_55] : memref<4x1x8xf32, #tpu.memory_space<vmem>>, vector<1x1x8xf32>
    %84 = vector.shape_cast %83 : vector<1x1x8xf32> to vector<1x8xf32>
    %85 = vector.broadcast %84 : vector<1x8xf32> to vector<32x8xf32>
    %86 = arith.addf %82, %85 : vector<32x8xf32>
    %c1_56 = arith.constant 1 : index
    %c0_57 = arith.constant 0 : index
    %c0_58 = arith.constant 0 : index
    %87 = vector.load %arg8[%c1_56, %c0_57, %c0_58] : memref<4x32x8xbf16, #tpu.memory_space<vmem>>, vector<1x32x8xbf16>
    %88 = vector.shape_cast %87 : vector<1x32x8xbf16> to vector<32x8xbf16>
    %cst_59 = arith.constant dense<0.000000e+00> : vector<32x8xf32>
    %89 = tpu.matmul %28, %88, %cst_59 {dimension_numbers = #tpu.dot_dimension_numbers<[1], [0], [0], [1], [0, 0, 1, 1], [], []>} : vector<32x32xbf16>, vector<32x8xbf16>, vector<32x8xf32> -> vector<32x8xf32>
    %c1_60 = arith.constant 1 : index
    %c0_61 = arith.constant 0 : index
    %c0_62 = arith.constant 0 : index
    %90 = vector.load %arg9[%c1_60, %c0_61, %c0_62] : memref<4x1x8xf32, #tpu.memory_space<vmem>>, vector<1x1x8xf32>
    %91 = vector.shape_cast %90 : vector<1x1x8xf32> to vector<1x8xf32>
    %92 = vector.broadcast %91 : vector<1x8xf32> to vector<32x8xf32>
    %93 = arith.addf %89, %92 : vector<32x8xf32>
    %94 = arith.truncf %79 : vector<32x8xf32> to vector<32x8xbf16>
    %95 = arith.truncf %86 : vector<32x8xf32> to vector<32x8xbf16>
    %cst_63 = arith.constant dense<0.000000e+00> : vector<32x32xf32>
    %96 = tpu.matmul %94, %95, %cst_63 {dimension_numbers = #tpu.dot_dimension_numbers<[1], [1], [0], [0], [0, 0, 1, 0], [], []>} : vector<32x8xbf16>, vector<32x8xbf16>, vector<32x32xf32> -> vector<32x32xf32>
    %97 = arith.addf %96, %1 : vector<32x32xf32>
    %cst_64 = arith.constant dense<0xFF800000> : vector<32xf32>
    %98 = vector.multi_reduction <maximumf>, %97, %cst_64 [1] : vector<32x32xf32> to vector<32xf32>
    %99 = vector.shape_cast %98 : vector<32xf32> to vector<32x1xf32>
    %100 = vector.broadcast %99 : vector<32x1xf32> to vector<32x32xf32>
    %101 = arith.subf %97, %100 : vector<32x32xf32>
    %102 = math.exp %101 : vector<32x32xf32>
    %cst_65 = arith.constant dense<0.000000e+00> : vector<32xf32>
    %103 = vector.multi_reduction <add>, %102, %cst_65 [1] : vector<32x32xf32> to vector<32xf32>
    %104 = vector.shape_cast %103 : vector<32xf32> to vector<32x1xf32>
    %105 = arith.truncf %102 : vector<32x32xf32> to vector<32x32xbf16>
    %106 = arith.truncf %93 : vector<32x8xf32> to vector<32x8xbf16>
    %cst_66 = arith.constant dense<0.000000e+00> : vector<32x8xf32>
    %107 = tpu.matmul %105, %106, %cst_66 {dimension_numbers = #tpu.dot_dimension_numbers<[1], [0], [0], [1], [0, 0, 1, 1], [], []>} : vector<32x32xbf16>, vector<32x8xbf16>, vector<32x8xf32> -> vector<32x8xf32>
    %108 = tpu.reciprocal %104 {approx = true} : vector<32x1xf32> -> vector<32x1xf32>
    %109 = vector.broadcast %108 : vector<32x1xf32> to vector<32x8xf32>
    %110 = arith.mulf %107, %109 : vector<32x8xf32>
    %c1_67 = arith.constant 1 : index
    %c0_68 = arith.constant 0 : index
    %c0_69 = arith.constant 0 : index
    %111 = vector.load %arg10[%c1_67, %c0_68, %c0_69] : memref<4x8x32xbf16, #tpu.memory_space<vmem>>, vector<1x8x32xbf16>
    %112 = vector.shape_cast %111 : vector<1x8x32xbf16> to vector<8x32xbf16>
    %113 = arith.truncf %110 : vector<32x8xf32> to vector<32x8xbf16>
    %cst_70 = arith.constant dense<0.000000e+00> : vector<32x32xf32>
    %114 = tpu.matmul %113, %112, %cst_70 {dimension_numbers = #tpu.dot_dimension_numbers<[1], [0], [0], [1], [0, 0, 1, 1], [], []>} : vector<32x8xbf16>, vector<8x32xbf16>, vector<32x32xf32> -> vector<32x32xf32>
    %115 = arith.addf %72, %114 : vector<32x32xf32>
    %c2 = arith.constant 2 : index
    %c0_71 = arith.constant 0 : index
    %c0_72 = arith.constant 0 : index
    %116 = vector.load %arg4[%c2, %c0_71, %c0_72] : memref<4x32x8xbf16, #tpu.memory_space<vmem>>, vector<1x32x8xbf16>
    %117 = vector.shape_cast %116 : vector<1x32x8xbf16> to vector<32x8xbf16>
    %cst_73 = arith.constant dense<0.000000e+00> : vector<32x8xf32>
    %118 = tpu.matmul %28, %117, %cst_73 {dimension_numbers = #tpu.dot_dimension_numbers<[1], [0], [0], [1], [0, 0, 1, 1], [], []>} : vector<32x32xbf16>, vector<32x8xbf16>, vector<32x8xf32> -> vector<32x8xf32>
    %c2_74 = arith.constant 2 : index
    %c0_75 = arith.constant 0 : index
    %c0_76 = arith.constant 0 : index
    %119 = vector.load %arg5[%c2_74, %c0_75, %c0_76] : memref<4x1x8xf32, #tpu.memory_space<vmem>>, vector<1x1x8xf32>
    %120 = vector.shape_cast %119 : vector<1x1x8xf32> to vector<1x8xf32>
    %121 = vector.broadcast %120 : vector<1x8xf32> to vector<32x8xf32>
    %122 = arith.addf %118, %121 : vector<32x8xf32>
    %c2_77 = arith.constant 2 : index
    %c0_78 = arith.constant 0 : index
    %c0_79 = arith.constant 0 : index
    %123 = vector.load %arg6[%c2_77, %c0_78, %c0_79] : memref<4x32x8xbf16, #tpu.memory_space<vmem>>, vector<1x32x8xbf16>
    %124 = vector.shape_cast %123 : vector<1x32x8xbf16> to vector<32x8xbf16>
    %cst_80 = arith.constant dense<0.000000e+00> : vector<32x8xf32>
    %125 = tpu.matmul %28, %124, %cst_80 {dimension_numbers = #tpu.dot_dimension_numbers<[1], [0], [0], [1], [0, 0, 1, 1], [], []>} : vector<32x32xbf16>, vector<32x8xbf16>, vector<32x8xf32> -> vector<32x8xf32>
    %c2_81 = arith.constant 2 : index
    %c0_82 = arith.constant 0 : index
    %c0_83 = arith.constant 0 : index
    %126 = vector.load %arg7[%c2_81, %c0_82, %c0_83] : memref<4x1x8xf32, #tpu.memory_space<vmem>>, vector<1x1x8xf32>
    %127 = vector.shape_cast %126 : vector<1x1x8xf32> to vector<1x8xf32>
    %128 = vector.broadcast %127 : vector<1x8xf32> to vector<32x8xf32>
    %129 = arith.addf %125, %128 : vector<32x8xf32>
    %c2_84 = arith.constant 2 : index
    %c0_85 = arith.constant 0 : index
    %c0_86 = arith.constant 0 : index
    %130 = vector.load %arg8[%c2_84, %c0_85, %c0_86] : memref<4x32x8xbf16, #tpu.memory_space<vmem>>, vector<1x32x8xbf16>
    %131 = vector.shape_cast %130 : vector<1x32x8xbf16> to vector<32x8xbf16>
    %cst_87 = arith.constant dense<0.000000e+00> : vector<32x8xf32>
    %132 = tpu.matmul %28, %131, %cst_87 {dimension_numbers = #tpu.dot_dimension_numbers<[1], [0], [0], [1], [0, 0, 1, 1], [], []>} : vector<32x32xbf16>, vector<32x8xbf16>, vector<32x8xf32> -> vector<32x8xf32>
    %c2_88 = arith.constant 2 : index
    %c0_89 = arith.constant 0 : index
    %c0_90 = arith.constant 0 : index
    %133 = vector.load %arg9[%c2_88, %c0_89, %c0_90] : memref<4x1x8xf32, #tpu.memory_space<vmem>>, vector<1x1x8xf32>
    %134 = vector.shape_cast %133 : vector<1x1x8xf32> to vector<1x8xf32>
    %135 = vector.broadcast %134 : vector<1x8xf32> to vector<32x8xf32>
    %136 = arith.addf %132, %135 : vector<32x8xf32>
    %137 = arith.truncf %122 : vector<32x8xf32> to vector<32x8xbf16>
    %138 = arith.truncf %129 : vector<32x8xf32> to vector<32x8xbf16>
    %cst_91 = arith.constant dense<0.000000e+00> : vector<32x32xf32>
    %139 = tpu.matmul %137, %138, %cst_91 {dimension_numbers = #tpu.dot_dimension_numbers<[1], [1], [0], [0], [0, 0, 1, 0], [], []>} : vector<32x8xbf16>, vector<32x8xbf16>, vector<32x32xf32> -> vector<32x32xf32>
    %140 = arith.addf %139, %1 : vector<32x32xf32>
    %cst_92 = arith.constant dense<0xFF800000> : vector<32xf32>
    %141 = vector.multi_reduction <maximumf>, %140, %cst_92 [1] : vector<32x32xf32> to vector<32xf32>
    %142 = vector.shape_cast %141 : vector<32xf32> to vector<32x1xf32>
    %143 = vector.broadcast %142 : vector<32x1xf32> to vector<32x32xf32>
    %144 = arith.subf %140, %143 : vector<32x32xf32>
    %145 = math.exp %144 : vector<32x32xf32>
    %cst_93 = arith.constant dense<0.000000e+00> : vector<32xf32>
    %146 = vector.multi_reduction <add>, %145, %cst_93 [1] : vector<32x32xf32> to vector<32xf32>
    %147 = vector.shape_cast %146 : vector<32xf32> to vector<32x1xf32>
    %148 = arith.truncf %145 : vector<32x32xf32> to vector<32x32xbf16>
    %149 = arith.truncf %136 : vector<32x8xf32> to vector<32x8xbf16>
    %cst_94 = arith.constant dense<0.000000e+00> : vector<32x8xf32>
    %150 = tpu.matmul %148, %149, %cst_94 {dimension_numbers = #tpu.dot_dimension_numbers<[1], [0], [0], [1], [0, 0, 1, 1], [], []>} : vector<32x32xbf16>, vector<32x8xbf16>, vector<32x8xf32> -> vector<32x8xf32>
    %151 = tpu.reciprocal %147 {approx = true} : vector<32x1xf32> -> vector<32x1xf32>
    %152 = vector.broadcast %151 : vector<32x1xf32> to vector<32x8xf32>
    %153 = arith.mulf %150, %152 : vector<32x8xf32>
    %c2_95 = arith.constant 2 : index
    %c0_96 = arith.constant 0 : index
    %c0_97 = arith.constant 0 : index
    %154 = vector.load %arg10[%c2_95, %c0_96, %c0_97] : memref<4x8x32xbf16, #tpu.memory_space<vmem>>, vector<1x8x32xbf16>
    %155 = vector.shape_cast %154 : vector<1x8x32xbf16> to vector<8x32xbf16>
    %156 = arith.truncf %153 : vector<32x8xf32> to vector<32x8xbf16>
    %cst_98 = arith.constant dense<0.000000e+00> : vector<32x32xf32>
    %157 = tpu.matmul %156, %155, %cst_98 {dimension_numbers = #tpu.dot_dimension_numbers<[1], [0], [0], [1], [0, 0, 1, 1], [], []>} : vector<32x8xbf16>, vector<8x32xbf16>, vector<32x32xf32> -> vector<32x32xf32>
    %158 = arith.addf %115, %157 : vector<32x32xf32>
    %c3 = arith.constant 3 : index
    %c0_99 = arith.constant 0 : index
    %c0_100 = arith.constant 0 : index
    %159 = vector.load %arg4[%c3, %c0_99, %c0_100] : memref<4x32x8xbf16, #tpu.memory_space<vmem>>, vector<1x32x8xbf16>
    %160 = vector.shape_cast %159 : vector<1x32x8xbf16> to vector<32x8xbf16>
    %cst_101 = arith.constant dense<0.000000e+00> : vector<32x8xf32>
    %161 = tpu.matmul %28, %160, %cst_101 {dimension_numbers = #tpu.dot_dimension_numbers<[1], [0], [0], [1], [0, 0, 1, 1], [], []>} : vector<32x32xbf16>, vector<32x8xbf16>, vector<32x8xf32> -> vector<32x8xf32>
    %c3_102 = arith.constant 3 : index
    %c0_103 = arith.constant 0 : index
    %c0_104 = arith.constant 0 : index
    %162 = vector.load %arg5[%c3_102, %c0_103, %c0_104] : memref<4x1x8xf32, #tpu.memory_space<vmem>>, vector<1x1x8xf32>
    %163 = vector.shape_cast %162 : vector<1x1x8xf32> to vector<1x8xf32>
    %164 = vector.broadcast %163 : vector<1x8xf32> to vector<32x8xf32>
    %165 = arith.addf %161, %164 : vector<32x8xf32>
    %c3_105 = arith.constant 3 : index
    %c0_106 = arith.constant 0 : index
    %c0_107 = arith.constant 0 : index
    %166 = vector.load %arg6[%c3_105, %c0_106, %c0_107] : memref<4x32x8xbf16, #tpu.memory_space<vmem>>, vector<1x32x8xbf16>
    %167 = vector.shape_cast %166 : vector<1x32x8xbf16> to vector<32x8xbf16>
    %cst_108 = arith.constant dense<0.000000e+00> : vector<32x8xf32>
    %168 = tpu.matmul %28, %167, %cst_108 {dimension_numbers = #tpu.dot_dimension_numbers<[1], [0], [0], [1], [0, 0, 1, 1], [], []>} : vector<32x32xbf16>, vector<32x8xbf16>, vector<32x8xf32> -> vector<32x8xf32>
    %c3_109 = arith.constant 3 : index
    %c0_110 = arith.constant 0 : index
    %c0_111 = arith.constant 0 : index
    %169 = vector.load %arg7[%c3_109, %c0_110, %c0_111] : memref<4x1x8xf32, #tpu.memory_space<vmem>>, vector<1x1x8xf32>
    %170 = vector.shape_cast %169 : vector<1x1x8xf32> to vector<1x8xf32>
    %171 = vector.broadcast %170 : vector<1x8xf32> to vector<32x8xf32>
    %172 = arith.addf %168, %171 : vector<32x8xf32>
    %c3_112 = arith.constant 3 : index
    %c0_113 = arith.constant 0 : index
    %c0_114 = arith.constant 0 : index
    %173 = vector.load %arg8[%c3_112, %c0_113, %c0_114] : memref<4x32x8xbf16, #tpu.memory_space<vmem>>, vector<1x32x8xbf16>
    %174 = vector.shape_cast %173 : vector<1x32x8xbf16> to vector<32x8xbf16>
    %cst_115 = arith.constant dense<0.000000e+00> : vector<32x8xf32>
    %175 = tpu.matmul %28, %174, %cst_115 {dimension_numbers = #tpu.dot_dimension_numbers<[1], [0], [0], [1], [0, 0, 1, 1], [], []>} : vector<32x32xbf16>, vector<32x8xbf16>, vector<32x8xf32> -> vector<32x8xf32>
    %c3_116 = arith.constant 3 : index
    %c0_117 = arith.constant 0 : index
    %c0_118 = arith.constant 0 : index
    %176 = vector.load %arg9[%c3_116, %c0_117, %c0_118] : memref<4x1x8xf32, #tpu.memory_space<vmem>>, vector<1x1x8xf32>
    %177 = vector.shape_cast %176 : vector<1x1x8xf32> to vector<1x8xf32>
    %178 = vector.broadcast %177 : vector<1x8xf32> to vector<32x8xf32>
    %179 = arith.addf %175, %178 : vector<32x8xf32>
    %180 = arith.truncf %165 : vector<32x8xf32> to vector<32x8xbf16>
    %181 = arith.truncf %172 : vector<32x8xf32> to vector<32x8xbf16>
    %cst_119 = arith.constant dense<0.000000e+00> : vector<32x32xf32>
    %182 = tpu.matmul %180, %181, %cst_119 {dimension_numbers = #tpu.dot_dimension_numbers<[1], [1], [0], [0], [0, 0, 1, 0], [], []>} : vector<32x8xbf16>, vector<32x8xbf16>, vector<32x32xf32> -> vector<32x32xf32>
    %183 = arith.addf %182, %1 : vector<32x32xf32>
    %cst_120 = arith.constant dense<0xFF800000> : vector<32xf32>
    %184 = vector.multi_reduction <maximumf>, %183, %cst_120 [1] : vector<32x32xf32> to vector<32xf32>
    %185 = vector.shape_cast %184 : vector<32xf32> to vector<32x1xf32>
    %186 = vector.broadcast %185 : vector<32x1xf32> to vector<32x32xf32>
    %187 = arith.subf %183, %186 : vector<32x32xf32>
    %188 = math.exp %187 : vector<32x32xf32>
    %cst_121 = arith.constant dense<0.000000e+00> : vector<32xf32>
    %189 = vector.multi_reduction <add>, %188, %cst_121 [1] : vector<32x32xf32> to vector<32xf32>
    %190 = vector.shape_cast %189 : vector<32xf32> to vector<32x1xf32>
    %191 = arith.truncf %188 : vector<32x32xf32> to vector<32x32xbf16>
    %192 = arith.truncf %179 : vector<32x8xf32> to vector<32x8xbf16>
    %cst_122 = arith.constant dense<0.000000e+00> : vector<32x8xf32>
    %193 = tpu.matmul %191, %192, %cst_122 {dimension_numbers = #tpu.dot_dimension_numbers<[1], [0], [0], [1], [0, 0, 1, 1], [], []>} : vector<32x32xbf16>, vector<32x8xbf16>, vector<32x8xf32> -> vector<32x8xf32>
    %194 = tpu.reciprocal %190 {approx = true} : vector<32x1xf32> -> vector<32x1xf32>
    %195 = vector.broadcast %194 : vector<32x1xf32> to vector<32x8xf32>
    %196 = arith.mulf %193, %195 : vector<32x8xf32>
    %c3_123 = arith.constant 3 : index
    %c0_124 = arith.constant 0 : index
    %c0_125 = arith.constant 0 : index
    %197 = vector.load %arg10[%c3_123, %c0_124, %c0_125] : memref<4x8x32xbf16, #tpu.memory_space<vmem>>, vector<1x8x32xbf16>
    %198 = vector.shape_cast %197 : vector<1x8x32xbf16> to vector<8x32xbf16>
    %199 = arith.truncf %196 : vector<32x8xf32> to vector<32x8xbf16>
    %cst_126 = arith.constant dense<0.000000e+00> : vector<32x32xf32>
    %200 = tpu.matmul %199, %198, %cst_126 {dimension_numbers = #tpu.dot_dimension_numbers<[1], [0], [0], [1], [0, 0, 1, 1], [], []>} : vector<32x8xbf16>, vector<8x32xbf16>, vector<32x32xf32> -> vector<32x32xf32>
    %201 = arith.addf %158, %200 : vector<32x32xf32>
    %202 = arith.addf %0, %201 : vector<32x32xf32>
    %c0_127 = arith.constant 0 : index
    %c0_128 = arith.constant 0 : index
    %c0_129 = arith.constant 0 : index
    %203 = vector.load %arg11[%c0_127, %c0_128, %c0_129] : memref<1x1x32xf32, #tpu.memory_space<vmem>>, vector<1x1x32xf32>
    %204 = vector.shape_cast %203 : vector<1x1x32xf32> to vector<1x32xf32>
    %205 = vector.broadcast %204 : vector<1x32xf32> to vector<32x32xf32>
    %206 = arith.addf %202, %205 : vector<32x32xf32>
    %c0_130 = arith.constant 0 : index
    %c0_131 = arith.constant 0 : index
    %c0_132 = arith.constant 0 : index
    %207 = vector.load %arg12[%c0_130, %c0_131, %c0_132] : memref<1x1x32xf32, #tpu.memory_space<vmem>>, vector<1x1x32xf32>
    %208 = vector.shape_cast %207 : vector<1x1x32xf32> to vector<1x32xf32>
    %c0_133 = arith.constant 0 : index
    %c0_134 = arith.constant 0 : index
    %c0_135 = arith.constant 0 : index
    %209 = vector.load %arg13[%c0_133, %c0_134, %c0_135] : memref<1x1x32xf32, #tpu.memory_space<vmem>>, vector<1x1x32xf32>
    %210 = vector.shape_cast %209 : vector<1x1x32xf32> to vector<1x32xf32>
    %cst_136 = arith.constant dense<0.000000e+00> : vector<32xf32>
    %211 = vector.multi_reduction <add>, %206, %cst_136 [1] : vector<32x32xf32> to vector<32xf32>
    %212 = vector.shape_cast %211 : vector<32xf32> to vector<32x1xf32>
    %cst_137 = arith.constant 3.200000e+01 : f32
    %213 = vector.broadcast %cst_137 : f32 to vector<32x1xf32>
    %214 = arith.divf %212, %213 : vector<32x1xf32>
    %215 = vector.broadcast %214 : vector<32x1xf32> to vector<32x32xf32>
    %216 = arith.subf %206, %215 : vector<32x32xf32>
    %217 = arith.mulf %216, %216 : vector<32x32xf32>
    %cst_138 = arith.constant dense<0.000000e+00> : vector<32xf32>
    %218 = vector.multi_reduction <add>, %217, %cst_138 [1] : vector<32x32xf32> to vector<32xf32>
    %219 = vector.shape_cast %218 : vector<32xf32> to vector<32x1xf32>
    %cst_139 = arith.constant 3.200000e+01 : f32
    %220 = vector.broadcast %cst_139 : f32 to vector<32x1xf32>
    %221 = arith.divf %219, %220 : vector<32x1xf32>
    %222 = vector.broadcast %214 : vector<32x1xf32> to vector<32x32xf32>
    %223 = arith.subf %206, %222 : vector<32x32xf32>
    %cst_140 = arith.constant 9.99999974E-6 : f32
    %224 = vector.broadcast %cst_140 : f32 to vector<32x1xf32>
    %225 = arith.addf %221, %224 : vector<32x1xf32>
    %226 = math.rsqrt %225 : vector<32x1xf32>
    %227 = vector.broadcast %226 : vector<32x1xf32> to vector<32x32xf32>
    %228 = arith.mulf %223, %227 : vector<32x32xf32>
    %229 = vector.broadcast %208 : vector<1x32xf32> to vector<32x32xf32>
    %230 = arith.mulf %228, %229 : vector<32x32xf32>
    %231 = vector.broadcast %210 : vector<1x32xf32> to vector<32x32xf32>
    %232 = arith.addf %230, %231 : vector<32x32xf32>
    %c0_141 = arith.constant 0 : index
    %c0_142 = arith.constant 0 : index
    %c0_143 = arith.constant 0 : index
    %233 = vector.load %arg14[%c0_141, %c0_142, %c0_143] : memref<1x32x128xbf16, #tpu.memory_space<vmem>>, vector<1x32x128xbf16>
    %234 = vector.shape_cast %233 : vector<1x32x128xbf16> to vector<32x128xbf16>
    %235 = arith.truncf %232 : vector<32x32xf32> to vector<32x32xbf16>
    %cst_144 = arith.constant dense<0.000000e+00> : vector<32x128xf32>
    %236 = tpu.matmul %235, %234, %cst_144 {dimension_numbers = #tpu.dot_dimension_numbers<[1], [0], [0], [1], [0, 0, 1, 1], [], []>} : vector<32x32xbf16>, vector<32x128xbf16>, vector<32x128xf32> -> vector<32x128xf32>
    %c0_145 = arith.constant 0 : index
    %c0_146 = arith.constant 0 : index
    %c0_147 = arith.constant 0 : index
    %237 = vector.load %arg15[%c0_145, %c0_146, %c0_147] : memref<1x1x128xf32, #tpu.memory_space<vmem>>, vector<1x1x128xf32>
    %238 = vector.shape_cast %237 : vector<1x1x128xf32> to vector<1x128xf32>
    %239 = vector.broadcast %238 : vector<1x128xf32> to vector<32x128xf32>
    %240 = arith.addf %236, %239 : vector<32x128xf32>
    %cst_148 = arith.constant 5.000000e-01 : f32
    %241 = vector.broadcast %cst_148 : f32 to vector<32x128xf32>
    %242 = arith.mulf %241, %240 : vector<32x128xf32>
    %cst_149 = arith.constant 4.471500e-02 : f32
    %243 = vector.broadcast %cst_149 : f32 to vector<32x128xf32>
    %244 = arith.mulf %243, %240 : vector<32x128xf32>
    %245 = arith.mulf %244, %240 : vector<32x128xf32>
    %246 = arith.mulf %245, %240 : vector<32x128xf32>
    %247 = arith.addf %240, %246 : vector<32x128xf32>
    %cst_150 = arith.constant 0.797884583 : f32
    %248 = vector.broadcast %cst_150 : f32 to vector<32x128xf32>
    %249 = arith.mulf %248, %247 : vector<32x128xf32>
    %250 = math.tanh %249 : vector<32x128xf32>
    %cst_151 = arith.constant 1.000000e+00 : f32
    %251 = vector.broadcast %cst_151 : f32 to vector<32x128xf32>
    %252 = arith.addf %251, %250 : vector<32x128xf32>
    %253 = arith.mulf %242, %252 : vector<32x128xf32>
    %c0_152 = arith.constant 0 : index
    %c0_153 = arith.constant 0 : index
    %c0_154 = arith.constant 0 : index
    %254 = vector.load %arg16[%c0_152, %c0_153, %c0_154] : memref<1x128x32xbf16, #tpu.memory_space<vmem>>, vector<1x128x32xbf16>
    %255 = vector.shape_cast %254 : vector<1x128x32xbf16> to vector<128x32xbf16>
    %256 = arith.truncf %253 : vector<32x128xf32> to vector<32x128xbf16>
    %cst_155 = arith.constant dense<0.000000e+00> : vector<32x32xf32>
    %257 = tpu.matmul %256, %255, %cst_155 {dimension_numbers = #tpu.dot_dimension_numbers<[1], [0], [0], [1], [0, 0, 1, 1], [], []>} : vector<32x128xbf16>, vector<128x32xbf16>, vector<32x32xf32> -> vector<32x32xf32>
    %258 = arith.addf %206, %257 : vector<32x32xf32>
    %c0_156 = arith.constant 0 : index
    %c0_157 = arith.constant 0 : index
    %c0_158 = arith.constant 0 : index
    %259 = vector.load %arg17[%c0_156, %c0_157, %c0_158] : memref<1x1x32xf32, #tpu.memory_space<vmem>>, vector<1x1x32xf32>
    %260 = vector.shape_cast %259 : vector<1x1x32xf32> to vector<1x32xf32>
    %261 = vector.broadcast %260 : vector<1x32xf32> to vector<32x32xf32>
    %262 = arith.addf %258, %261 : vector<32x32xf32>
    %c0_159 = arith.constant 0 : index
    %c0_160 = arith.constant 0 : index
    %263 = vector.load %arg18[%c0_159, %c0_160] : memref<1x32xf32, #tpu.memory_space<vmem>>, vector<1x32xf32>
    %c0_161 = arith.constant 0 : index
    %c0_162 = arith.constant 0 : index
    %264 = vector.load %arg19[%c0_161, %c0_162] : memref<1x32xf32, #tpu.memory_space<vmem>>, vector<1x32xf32>
    %cst_163 = arith.constant dense<0.000000e+00> : vector<32xf32>
    %265 = vector.multi_reduction <add>, %262, %cst_163 [1] : vector<32x32xf32> to vector<32xf32>
    %266 = vector.shape_cast %265 : vector<32xf32> to vector<32x1xf32>
    %cst_164 = arith.constant 3.200000e+01 : f32
    %267 = vector.broadcast %cst_164 : f32 to vector<32x1xf32>
    %268 = arith.divf %266, %267 : vector<32x1xf32>
    %269 = vector.broadcast %268 : vector<32x1xf32> to vector<32x32xf32>
    %270 = arith.subf %262, %269 : vector<32x32xf32>
    %271 = arith.mulf %270, %270 : vector<32x32xf32>
    %cst_165 = arith.constant dense<0.000000e+00> : vector<32xf32>
    %272 = vector.multi_reduction <add>, %271, %cst_165 [1] : vector<32x32xf32> to vector<32xf32>
    %273 = vector.shape_cast %272 : vector<32xf32> to vector<32x1xf32>
    %cst_166 = arith.constant 3.200000e+01 : f32
    %274 = vector.broadcast %cst_166 : f32 to vector<32x1xf32>
    %275 = arith.divf %273, %274 : vector<32x1xf32>
    %276 = vector.broadcast %268 : vector<32x1xf32> to vector<32x32xf32>
    %277 = arith.subf %262, %276 : vector<32x32xf32>
    %cst_167 = arith.constant 9.99999974E-6 : f32
    %278 = vector.broadcast %cst_167 : f32 to vector<32x1xf32>
    %279 = arith.addf %275, %278 : vector<32x1xf32>
    %280 = math.rsqrt %279 : vector<32x1xf32>
    %281 = vector.broadcast %280 : vector<32x1xf32> to vector<32x32xf32>
    %282 = arith.mulf %277, %281 : vector<32x32xf32>
    %283 = vector.broadcast %263 : vector<1x32xf32> to vector<32x32xf32>
    %284 = arith.mulf %282, %283 : vector<32x32xf32>
    %285 = vector.broadcast %264 : vector<1x32xf32> to vector<32x32xf32>
    %286 = arith.addf %284, %285 : vector<32x32xf32>
    %c0_168 = arith.constant 0 : index
    %c0_169 = arith.constant 0 : index
    %287 = vector.load %arg20[%c0_168, %c0_169] : memref<32x128xbf16, #tpu.memory_space<vmem>>, vector<32x128xbf16>
    %288 = arith.truncf %286 : vector<32x32xf32> to vector<32x32xbf16>
    %cst_170 = arith.constant dense<0.000000e+00> : vector<32x128xf32>
    %289 = tpu.matmul %288, %287, %cst_170 {dimension_numbers = #tpu.dot_dimension_numbers<[1], [0], [0], [1], [0, 0, 1, 1], [], []>} : vector<32x32xbf16>, vector<32x128xbf16>, vector<32x128xf32> -> vector<32x128xf32>
    %c0_171 = arith.constant 0 : index
    %c0_172 = arith.constant 0 : index
    %290 = vector.load %arg21[%c0_171, %c0_172] : memref<32x128xf32, #tpu.memory_space<vmem>>, vector<32x128xf32>
    tpu.vector_store %arg21[%c0_171, %c0_172], %289 {strides = array<i32>} : memref<32x128xf32, #tpu.memory_space<vmem>>, vector<32x128xf32>,
    return
  }
}

</mosaic_0001>

<llo_original>
// kernel: incremental_gpt_forward.1
$region0: #{incremental_gpt_forward.1}
  #allocation0 [shape = 'u32[]', space=smem, size = 0x4, offset = 0x4, fixed_abs, tag = 'smem constant byte address 0x4 - core index']
  #allocation1 [shape = 'u32[72,128]{1,0:T(1,128)}', space=vmem, size = 0x9000, scoped, tag = 'internal scratch']
  %s0 = inlined_call_operand.vmem [shape: f32[32,32], index: 0, kind: input, shape index: {}]
  %s1 = inlined_call_operand.vmem [shape: f32[32,32], index: 1, kind: input, shape index: {}]
  %s2 = inlined_call_operand.vmem [shape: f32[1,1,32], index: 2, kind: input, shape index: {}]
  %s3 = inlined_call_operand.vmem [shape: f32[1,1,32], index: 3, kind: input, shape index: {}]
  %s4 = inlined_call_operand.vmem [shape: bf16[4,32,8], index: 4, kind: input, shape index: {}]
  %s5 = inlined_call_operand.vmem [shape: f32[4,1,8], index: 5, kind: input, shape index: {}]
  %s6 = inlined_call_operand.vmem [shape: bf16[4,32,8], index: 6, kind: input, shape index: {}]
  %s7 = inlined_call_operand.vmem [shape: f32[4,1,8], index: 7, kind: input, shape index: {}]
  %s8 = inlined_call_operand.vmem [shape: bf16[4,32,8], index: 8, kind: input, shape index: {}]
  %s9 = inlined_call_operand.vmem [shape: f32[4,1,8], index: 9, kind: input, shape index: {}]
  %s10 = inlined_call_operand.vmem [shape: bf16[4,8,32], index: 10, kind: input, shape index: {}]
  %s11 = inlined_call_operand.vmem [shape: f32[1,1,32], index: 11, kind: input, shape index: {}]
  %s12 = inlined_call_operand.vmem [shape: f32[1,1,32], index: 12, kind: input, shape index: {}]
  %s13 = inlined_call_operand.vmem [shape: f32[1,1,32], index: 13, kind: input, shape index: {}]
  %s14 = inlined_call_operand.vmem [shape: bf16[1,32,128], index: 14, kind: input, shape index: {}]
  %s15 = inlined_call_operand.vmem [shape: f32[1,1,128], index: 15, kind: input, shape index: {}]
  %s16 = inlined_call_operand.vmem [shape: bf16[1,128,32], index: 16, kind: input, shape index: {}]
  %s17 = inlined_call_operand.vmem [shape: f32[1,1,32], index: 17, kind: input, shape index: {}]
  %s18 = inlined_call_operand.vmem [shape: f32[1,32], index: 18, kind: input, shape index: {}]
  %s19 = inlined_call_operand.vmem [shape: f32[1,32], index: 19, kind: input, shape index: {}]
  %s20 = inlined_call_operand.vmem [shape: bf16[32,128], index: 20, kind: input, shape index: {}]
  %s21 = inlined_call_operand.hbm [shape: f32[32,128], index: 21, kind: output, shape index: {}]
  %s22 = sld [smem:[#allocation0]]
  $region94: #{incremental_gpt_forward.1} parent=0
    _
  %s24 = ssub.s32 1, %s22
  %s25 = scalar_select 0, %s24, %s22
  $region1: #{incremental_gpt_forward.1} parent=0
    #allocation2 [shape = 'u8[16384]{0}', space=vmem, size = 0x4000, scoped, tag = 'output window, operand 0, single buffered']
    #allocation3 [shape = 's32[1]{0}', space=sflag, size = 0x4, scoped, tag = 'scoped memory for incremental_gpt_forward.1']
    %26 = vsyncpa [#allocation3], 0
    // Predicated region
    $region2: #{incremental_gpt_forward.1} parent=1 // pred_check
      _
    $region3: #{incremental_gpt_forward.1} parent=1 // pred_check_branch
      %28 = sbr.rel (0) target = $region5
    $region4: #{incremental_gpt_forward.1} parent=1 // pred_region
      _
    $region5: #{incremental_gpt_forward.1} parent=1 // pred_fallthru
      _
    // Predicated region
    $region6: #{incremental_gpt_forward.1} parent=1 // pred_check
      _
    $region7: #{incremental_gpt_forward.1} parent=1 // pred_check_branch
      %30 = sbr.rel (0) target = $region9
    $region8: #{incremental_gpt_forward.1} parent=1 // pred_region
      _
    $region9: #{incremental_gpt_forward.1} parent=1 // pred_fallthru
      _
    // Predicated region
    $region10: #{incremental_gpt_forward.1} parent=1 // pred_check
      _
    $region11: #{incremental_gpt_forward.1} parent=1 // pred_check_branch
      %32 = sbr.rel (0) target = $region13
    $region12: #{incremental_gpt_forward.1} parent=1 // pred_region
      _
    $region13: #{incremental_gpt_forward.1} parent=1 // pred_fallthru
      _
    // Predicated region
    $region14: #{incremental_gpt_forward.1} parent=1 // pred_check
      _
    $region15: #{incremental_gpt_forward.1} parent=1 // pred_check_branch
      %34 = sbr.rel (0) target = $region17
    $region16: #{incremental_gpt_forward.1} parent=1 // pred_region
      _
    $region17: #{incremental_gpt_forward.1} parent=1 // pred_fallthru
      _
    // Predicated region
    $region18: #{incremental_gpt_forward.1} parent=1 // pred_check
      _
    $region19: #{incremental_gpt_forward.1} parent=1 // pred_check_branch
      %36 = sbr.rel (0) target = $region21
    $region20: #{incremental_gpt_forward.1} parent=1 // pred_region
      _
    $region21: #{incremental_gpt_forward.1} parent=1 // pred_fallthru
      _
    // Predicated region
    $region22: #{incremental_gpt_forward.1} parent=1 // pred_check
      _
    $region23: #{incremental_gpt_forward.1} parent=1 // pred_check_branch
      %38 = sbr.rel (0) target = $region25
    $region24: #{incremental_gpt_forward.1} parent=1 // pred_region
      _
    $region25: #{incremental_gpt_forward.1} parent=1 // pred_fallthru
      _
    // Predicated region
    $region26: #{incremental_gpt_forward.1} parent=1 // pred_check
      _
    $region27: #{incremental_gpt_forward.1} parent=1 // pred_check_branch
      %40 = sbr.rel (0) target = $region29
    $region28: #{incremental_gpt_forward.1} parent=1 // pred_region
      _
    $region29: #{incremental_gpt_forward.1} parent=1 // pred_fallthru
      _
    // Predicated region
    $region30: #{incremental_gpt_forward.1} parent=1 // pred_check
      _
    $region31: #{incremental_gpt_forward.1} parent=1 // pred_check_branch
      %42 = sbr.rel (0) target = $region33
    $region32: #{incremental_gpt_forward.1} parent=1 // pred_region
      _
    $region33: #{incremental_gpt_forward.1} parent=1 // pred_fallthru
      _
    // Predicated region
    $region34: #{incremental_gpt_forward.1} parent=1 // pred_check
      _
    $region35: #{incremental_gpt_forward.1} parent=1 // pred_check_branch
      %44 = sbr.rel (0) target = $region37
    $region36: #{incremental_gpt_forward.1} parent=1 // pred_region
      _
    $region37: #{incremental_gpt_forward.1} parent=1 // pred_fallthru
      _
    // Predicated region
    $region38: #{incremental_gpt_forward.1} parent=1 // pred_check
      _
    $region39: #{incremental_gpt_forward.1} parent=1 // pred_check_branch
      %46 = sbr.rel (0) target = $region41
    $region40: #{incremental_gpt_forward.1} parent=1 // pred_region
      _
    $region41: #{incremental_gpt_forward.1} parent=1 // pred_fallthru
      _
    // Predicated region
    $region42: #{incremental_gpt_forward.1} parent=1 // pred_check
      _
    $region43: #{incremental_gpt_forward.1} parent=1 // pred_check_branch
      %48 = sbr.rel (0) target = $region45
    $region44: #{incremental_gpt_forward.1} parent=1 // pred_region
      _
    $region45: #{incremental_gpt_forward.1} parent=1 // pred_fallthru
      _
    // Predicated region
    $region46: #{incremental_gpt_forward.1} parent=1 // pred_check
      _
    $region47: #{incremental_gpt_forward.1} parent=1 // pred_check_branch
      %50 = sbr.rel (0) target = $region49
    $region48: #{incremental_gpt_forward.1} parent=1 // pred_region
      _
    $region49: #{incremental_gpt_forward.1} parent=1 // pred_fallthru
      _
    // Predicated region
    $region50: #{incremental_gpt_forward.1} parent=1 // pred_check
      _
    $region51: #{incremental_gpt_forward.1} parent=1 // pred_check_branch
      %52 = sbr.rel (0) target = $region53
    $region52: #{incremental_gpt_forward.1} parent=1 // pred_region
      _
    $region53: #{incremental_gpt_forward.1} parent=1 // pred_fallthru
      _
    // Predicated region
    $region54: #{incremental_gpt_forward.1} parent=1 // pred_check
      _
    $region55: #{incremental_gpt_forward.1} parent=1 // pred_check_branch
      %54 = sbr.rel (0) target = $region57
    $region56: #{incremental_gpt_forward.1} parent=1 // pred_region
      _
    $region57: #{incremental_gpt_forward.1} parent=1 // pred_fallthru
      _
    // Predicated region
    $region58: #{incremental_gpt_forward.1} parent=1 // pred_check
      _
    $region59: #{incremental_gpt_forward.1} parent=1 // pred_check_branch
      %56 = sbr.rel (0) target = $region61
    $region60: #{incremental_gpt_forward.1} parent=1 // pred_region
      _
    $region61: #{incremental_gpt_forward.1} parent=1 // pred_fallthru
      _
    // Predicated region
    $region62: #{incremental_gpt_forward.1} parent=1 // pred_check
      _
    $region63: #{incremental_gpt_forward.1} parent=1 // pred_check_branch
      %58 = sbr.rel (0) target = $region65
    $region64: #{incremental_gpt_forward.1} parent=1 // pred_region
      _
    $region65: #{incremental_gpt_forward.1} parent=1 // pred_fallthru
      _
    // Predicated region
    $region66: #{incremental_gpt_forward.1} parent=1 // pred_check
      _
    $region67: #{incremental_gpt_forward.1} parent=1 // pred_check_branch
      %60 = sbr.rel (0) target = $region69
    $region68: #{incremental_gpt_forward.1} parent=1 // pred_region
      _
    $region69: #{incremental_gpt_forward.1} parent=1 // pred_fallthru
      _
    // Predicated region
    $region70: #{incremental_gpt_forward.1} parent=1 // pred_check
      _
    $region71: #{incremental_gpt_forward.1} parent=1 // pred_check_branch
      %62 = sbr.rel (0) target = $region73
    $region72: #{incremental_gpt_forward.1} parent=1 // pred_region
      _
    $region73: #{incremental_gpt_forward.1} parent=1 // pred_fallthru
      _
    // Predicated region
    $region74: #{incremental_gpt_forward.1} parent=1 // pred_check
      _
    $region75: #{incremental_gpt_forward.1} parent=1 // pred_check_branch
      %64 = sbr.rel (0) target = $region77
    $region76: #{incremental_gpt_forward.1} parent=1 // pred_region
      _
    $region77: #{incremental_gpt_forward.1} parent=1 // pred_fallthru
      _
    // Predicated region
    $region78: #{incremental_gpt_forward.1} parent=1 // pred_check
      _
    $region79: #{incremental_gpt_forward.1} parent=1 // pred_check_branch
      %66 = sbr.rel (0) target = $region81
    $region80: #{incremental_gpt_forward.1} parent=1 // pred_region
      _
    $region81: #{incremental_gpt_forward.1} parent=1 // pred_fallthru
      _
    // Predicated region
    $region82: #{incremental_gpt_forward.1} parent=1 // pred_check
      _
    $region83: #{incremental_gpt_forward.1} parent=1 // pred_check_branch
      %68 = sbr.rel (0) target = $region85
    $region84: #{incremental_gpt_forward.1} parent=1 // pred_region
      _
    $region85: #{incremental_gpt_forward.1} parent=1 // pred_fallthru
      _
    %v70 = vld [vmem:[%s0] sm:$0xff]
    %v71 = vld [vmem:[%s0 + $0x8] sm:$0xff]
    %v72 = vld [vmem:[%s0 + $0x10] sm:$0xff]
    %v73 = vld [vmem:[%s0 + $0x18] sm:$0xff]
    %v74 = vld [vmem:[%s1] sm:$0xff]
    %v75 = vld [vmem:[%s1 + $0x8] sm:$0xff]
    %v76 = vld [vmem:[%s1 + $0x10] sm:$0xff]
    %v77 = vld [vmem:[%s1 + $0x18] sm:$0xff]
    %v78 = vld [vmem:[%s2] sm:$0x1]
    %v79 = vld [vmem:[%s3] sm:$0x1]
    %vm80 = vcmask 261120
    %v81 = vsel %vm80, %v70, 0.0
    %82 = vadd.xlane.f32.xlu0 %v81
    %v83 = vpop.xlane.xlu0 %82
    %v84 = vsel %vm80, %v71, 0.0
    %85 = vadd.xlane.f32.xlu0 %v84
    %v86 = vpop.xlane.xlu0 %85
    %v87 = vsel %vm80, %v72, 0.0
    %88 = vadd.xlane.f32.xlu0 %v87
    %v89 = vpop.xlane.xlu0 %88
    %v90 = vsel %vm80, %v73, 0.0
    %91 = vadd.xlane.f32.xlu0 %v90
    %v92 = vpop.xlane.xlu0 %91
    %v93 = vrcp.pop 32.0
    %v94 = vmul.f32 32.0, %v93
    %v95 = vsub.f32 1.0, %v94
    %v96 = vmul.f32 %v93, %v95
    %v97 = vadd.f32 %v93, %v96
    %vm98 = vweird.f32 %v93
    %v99 = vsel %vm98, %v93, %v97
    %v100 = vmul.f32 %v83, %v99
    %v101 = vmul.f32 %v86, %v99
    %v102 = vmul.f32 %v89, %v99
    %v103 = vmul.f32 %v92, %v99
    %v104 = vsub.f32 %v70, %v100
    %v105 = vsub.f32 %v71, %v101
    %v106 = vsub.f32 %v72, %v102
    %v107 = vsub.f32 %v73, %v103
    %v108 = vmul.f32 %v104, %v104
    %v109 = vmul.f32 %v105, %v105
    %v110 = vmul.f32 %v106, %v106
    %v111 = vmul.f32 %v107, %v107
    %v112 = vsel %vm80, %v108, 0.0
    %113 = vadd.xlane.f32.xlu0 %v112
    %v114 = vpop.xlane.xlu0 %113
    %v115 = vsel %vm80, %v109, 0.0
    %116 = vadd.xlane.f32.xlu0 %v115
    %v117 = vpop.xlane.xlu0 %116
    %v118 = vsel %vm80, %v110, 0.0
    %119 = vadd.xlane.f32.xlu0 %v118
    %v120 = vpop.xlane.xlu0 %119
    %v121 = vsel %vm80, %v111, 0.0
    %122 = vadd.xlane.f32.xlu0 %v121
    %v123 = vpop.xlane.xlu0 %122
    %v124 = vmul.f32 %v114, %v99
    %v125 = vmul.f32 %v117, %v99
    %v126 = vmul.f32 %v120, %v99
    %v127 = vmul.f32 %v123, %v99
    %v128 = vadd.f32 %v124, 1e-05
    %v129 = vadd.f32 %v125, 1e-05
    %v130 = vadd.f32 %v126, 1e-05
    %v131 = vadd.f32 %v127, 1e-05
    %v132 = vrsqrt.pop %v128
    %v133 = vmul.f32 %v132, %v128
    %v134 = vmul.f32 %v133, %v132
    %v135 = vmul.f32 0.5, %v134
    %v136 = vsub.f32 1.5, %v135
    %v137 = vmul.f32 %v132, %v136
    %vm138 = vweird.f32 %v128
    %vm139 = vweird.f32 %v132
    %vm140 = vmor %vm138, %vm139
    %v141 = vsel %vm140, %v132, %v137
    %v142 = vrsqrt.pop %v129
    %v143 = vmul.f32 %v142, %v129
    %v144 = vmul.f32 %v143, %v142
    %v145 = vmul.f32 0.5, %v144
    %v146 = vsub.f32 1.5, %v145
    %v147 = vmul.f32 %v142, %v146
    %vm148 = vweird.f32 %v129
    %vm149 = vweird.f32 %v142
    %vm150 = vmor %vm148, %vm149
    %v151 = vsel %vm150, %v142, %v147
    %v152 = vrsqrt.pop %v130
    %v153 = vmul.f32 %v152, %v130
    %v154 = vmul.f32 %v153, %v152
    %v155 = vmul.f32 0.5, %v154
    %v156 = vsub.f32 1.5, %v155
    %v157 = vmul.f32 %v152, %v156
    %vm158 = vweird.f32 %v130
    %vm159 = vweird.f32 %v152
    %vm160 = vmor %vm158, %vm159
    %v161 = vsel %vm160, %v152, %v157
    %v162 = vrsqrt.pop %v131
    %v163 = vmul.f32 %v162, %v131
    %v164 = vmul.f32 %v163, %v162
    %v165 = vmul.f32 0.5, %v164
    %v166 = vsub.f32 1.5, %v165
    %v167 = vmul.f32 %v162, %v166
    %vm168 = vweird.f32 %v131
    %vm169 = vweird.f32 %v162
    %vm170 = vmor %vm168, %vm169
    %v171 = vsel %vm170, %v162, %v167
    %v172 = vmul.f32 %v104, %v141
    %v173 = vmul.f32 %v105, %v151
    %v174 = vmul.f32 %v106, %v161
    %v175 = vmul.f32 %v107, %v171
    %v177 = vperm.slane %v78, 0
    %v179 = vmul.f32 %v172, %v177
    %v180 = vmul.f32 %v173, %v177
    %v181 = vmul.f32 %v174, %v177
    %v182 = vmul.f32 %v175, %v177
    %v184 = vperm.slane %v79, 0
    %v186 = vadd.f32 %v179, %v184
    %v187 = vadd.f32 %v180, %v184
    %v188 = vadd.f32 %v181, %v184
    %v189 = vadd.f32 %v182, %v184
    %v190 = vpack.c.bf16 %v187, %v186
    %v191 = vpack.c.bf16 %v189, %v188
    %v192 = vld [vmem:[%s4] sm:$0xf]
    %v193 = vld [vmem:[%s4 + $0x4] sm:$0xf]
    %v194 = vld [vmem:[%s4 + $0x8] sm:$0xf]
    %v195 = vld [vmem:[%s4 + $0xc] sm:$0xf]
    %v196 = vld [vmem:[%s5] sm:$0x1]
    %v198 = vperm.slane %v196, 0
    %v204 = vunpack.c.l.b16 %v192
    %v205 = vunpack.c.l.b16 %v193
    %v206 = vunpack.c.l.b16 %v194
    %v207 = vunpack.c.l.b16 %v195
    %v208 = vpack.c.b16 %v205, %v204
    %v209 = vpack.c.b16 %v207, %v206
    %v213 = vsel %vm80, %v190, 0
    %v216 = vsel %vm80, %v191, 0
    %218 = vmatpush.bf16.msra.mxu0 0
    %219 = vmatpush.bf16.msra.mxu0 0
    %220 = vmatpush.bf16.msra.mxu0 0
    %221 = vmatpush.bf16.msra.mxu0 0
    %222 = vmatpush.bf16.msra.mxu0 0
    %223 = vmatpush.bf16.msra.mxu0 0
    %224 = vmatpush.bf16.msra.mxu0 %v209
    %225 = vmatpush.bf16.msra.mxu0 %v208
    %226 = vmatmul.bf16.gmra.mxu0 %v213
    %v227 = vpop.f32.mrf.mxu0
    %v228 = vadd.f32 %v198, %v227
    %v229 = vpop.f32.mrf.mxu0
    %v230 = vadd.f32 %v198, %v229
    %231 = vmatmul.bf16.gmra.mxu0 %v216
    %v232 = vpop.f32.mrf.mxu0
    %v233 = vadd.f32 %v198, %v232
    %v234 = vpop.f32.mrf.mxu0
    %v235 = vadd.f32 %v198, %v234
    %236 = vdwg.mxu0
    %v237 = vld [vmem:[%s6] sm:$0xf]
    %v238 = vld [vmem:[%s6 + $0x4] sm:$0xf]
    %v239 = vld [vmem:[%s6 + $0x8] sm:$0xf]
    %v240 = vld [vmem:[%s6 + $0xc] sm:$0xf]
    %v241 = vld [vmem:[%s7] sm:$0x1]
    %v243 = vperm.slane %v241, 0
    %v249 = vunpack.c.l.b16 %v237
    %v250 = vunpack.c.l.b16 %v238
    %v251 = vunpack.c.l.b16 %v239
    %v252 = vunpack.c.l.b16 %v240
    %v253 = vpack.c.b16 %v250, %v249
    %v254 = vpack.c.b16 %v252, %v251
    %257 = vmatpush.bf16.msra.mxu0 0
    %258 = vmatpush.bf16.msra.mxu0 0
    %259 = vmatpush.bf16.msra.mxu0 0
    %260 = vmatpush.bf16.msra.mxu0 0
    %261 = vmatpush.bf16.msra.mxu0 0
    %262 = vmatpush.bf16.msra.mxu0 0
    %263 = vmatpush.bf16.msra.mxu0 %v254
    %264 = vmatpush.bf16.msra.mxu0 %v253
    %265 = vmatmul.bf16.gmra.mxu0 %v213
    %v266 = vpop.f32.mrf.mxu0
    %v267 = vadd.f32 %v243, %v266
    %v268 = vpop.f32.mrf.mxu0
    %v269 = vadd.f32 %v243, %v268
    %270 = vmatmul.bf16.gmra.mxu0 %v216
    %v271 = vpop.f32.mrf.mxu0
    %v272 = vadd.f32 %v243, %v271
    %v273 = vpop.f32.mrf.mxu0
    %v274 = vadd.f32 %v243, %v273
    %275 = vdwg.mxu0
    %v276 = vld [vmem:[%s8] sm:$0xf]
    %v277 = vld [vmem:[%s8 + $0x4] sm:$0xf]
    %v278 = vld [vmem:[%s8 + $0x8] sm:$0xf]
    %v279 = vld [vmem:[%s8 + $0xc] sm:$0xf]
    %v280 = vld [vmem:[%s9] sm:$0x1]
    %v282 = vperm.slane %v280, 0
    %v288 = vunpack.c.l.b16 %v276
    %v289 = vunpack.c.l.b16 %v277
    %v290 = vunpack.c.l.b16 %v278
    %v291 = vunpack.c.l.b16 %v279
    %v292 = vpack.c.b16 %v289, %v288
    %v293 = vpack.c.b16 %v291, %v290
    %296 = vmatpush.bf16.msra.mxu0 0
    %297 = vmatpush.bf16.msra.mxu0 0
    %298 = vmatpush.bf16.msra.mxu0 0
    %299 = vmatpush.bf16.msra.mxu0 0
    %300 = vmatpush.bf16.msra.mxu0 0
    %301 = vmatpush.bf16.msra.mxu0 0
    %302 = vmatpush.bf16.msra.mxu0 %v293
    %303 = vmatpush.bf16.msra.mxu0 %v292
    %304 = vmatmul.bf16.gmra.mxu0 %v213
    %v305 = vpop.f32.mrf.mxu0
    %v306 = vadd.f32 %v282, %v305
    %v307 = vpop.f32.mrf.mxu0
    %v308 = vadd.f32 %v282, %v307
    %309 = vmatmul.bf16.gmra.mxu0 %v216
    %v310 = vpop.f32.mrf.mxu0
    %v311 = vadd.f32 %v282, %v310
    %v312 = vpop.f32.mrf.mxu0
    %v313 = vadd.f32 %v282, %v312
    %314 = vdwg.mxu0
    %v315 = vpack.c.bf16 %v230, %v228
    %v316 = vpack.c.bf16 %v235, %v233
    %v317 = vpack.c.bf16 %v269, %v267
    %v318 = vpack.c.bf16 %v274, %v272
    %vm319 = vcmask 64512
    %v321 = vsel %vm319, %v315, 0
    %v324 = vsel %vm319, %v316, 0
    %v327 = vsel %vm319, %v317, 0
    %v330 = vsel %vm319, %v318, 0
    %332 = vmatpush.bf16.xpose.msra.mxu0 0
    %333 = vmatpush.bf16.xpose.msra.mxu0 0
    %334 = vmatpush.bf16.xpose.msra.mxu0 0
    %335 = vmatpush.bf16.xpose.msra.mxu0 0
    %336 = vmatpush.bf16.xpose.msra.mxu0 0
    %337 = vmatpush.bf16.xpose.msra.mxu0 0
    %338 = vmatpush.bf16.xpose.msra.mxu0 %v330
    %339 = vmatpush.bf16.xpose.msra.mxu0 %v327
    %340 = vmatmul.bf16.gmra.mxu0 %v321
    %v341 = vpop.f32.mrf.mxu0
    %v342 = vadd.f32 %v74, %v341
    %v343 = vpop.f32.mrf.mxu0
    %v344 = vadd.f32 %v75, %v343
    %345 = vmatmul.bf16.gmra.mxu0 %v324
    %v346 = vpop.f32.mrf.mxu0
    %v347 = vadd.f32 %v76, %v346
    %v348 = vpop.f32.mrf.mxu0
    %v349 = vadd.f32 %v77, %v348
    %350 = vdwg.mxu0
    %v351 = vsel %vm80, %v342, -inf
    %352 = vmax.xlane.f32.xlu0 %v351
    %v353 = vpop.xlane.xlu0 %352
    %v354 = vsel %vm80, %v344, -inf
    %355 = vmax.xlane.f32.xlu0 %v354
    %v356 = vpop.xlane.xlu0 %355
    %v357 = vsel %vm80, %v347, -inf
    %358 = vmax.xlane.f32.xlu0 %v357
    %v359 = vpop.xlane.xlu0 %358
    %v360 = vsel %vm80, %v349, -inf
    %361 = vmax.xlane.f32.xlu0 %v360
    %v362 = vpop.xlane.xlu0 %361
    %v363 = vsub.f32 %v342, %v353
    %v364 = vsub.f32 %v344, %v356
    %v365 = vsub.f32 %v347, %v359
    %v366 = vsub.f32 %v349, %v362
    %v367 = vmul.f32 %v363, 1.442695
    %v368 = vpow.pop %v367
    %v369 = vmul.f32 %v364, 1.442695
    %v370 = vpow.pop %v369
    %v371 = vmul.f32 %v365, 1.442695
    %v372 = vpow.pop %v371
    %v373 = vmul.f32 %v366, 1.442695
    %v374 = vpow.pop %v373
    %v375 = vsel %vm80, %v368, 0.0
    %376 = vadd.xlane.f32.xlu0 %v375
    %v377 = vpop.xlane.xlu0 %376
    %v378 = vsel %vm80, %v370, 0.0
    %379 = vadd.xlane.f32.xlu0 %v378
    %v380 = vpop.xlane.xlu0 %379
    %v381 = vsel %vm80, %v372, 0.0
    %382 = vadd.xlane.f32.xlu0 %v381
    %v383 = vpop.xlane.xlu0 %382
    %v384 = vsel %vm80, %v374, 0.0
    %385 = vadd.xlane.f32.xlu0 %v384
    %v386 = vpop.xlane.xlu0 %385
    %v387 = vpack.c.bf16 %v370, %v368
    %v388 = vpack.c.bf16 %v374, %v372
    %v389 = vpack.c.bf16 %v308, %v306
    %v390 = vpack.c.bf16 %v313, %v311
    %v392 = vsel %vm80, %v387, 0
    %v395 = vsel %vm80, %v388, 0
    %397 = vmatpush.bf16.msra.mxu0 0
    %398 = vmatpush.bf16.msra.mxu0 0
    %399 = vmatpush.bf16.msra.mxu0 0
    %400 = vmatpush.bf16.msra.mxu0 0
    %401 = vmatpush.bf16.msra.mxu0 0
    %402 = vmatpush.bf16.msra.mxu0 0
    %403 = vmatpush.bf16.msra.mxu0 %v390
    %404 = vmatpush.bf16.msra.mxu0 %v389
    %405 = vmatmul.bf16.gmra.mxu0 %v392
    %v406 = vpop.f32.mrf.mxu0
    %v407 = vadd.f32 0.0, %v406
    %v408 = vpop.f32.mrf.mxu0
    %v409 = vadd.f32 0.0, %v408
    %410 = vmatmul.bf16.gmra.mxu0 %v395
    %v411 = vpop.f32.mrf.mxu0
    %v412 = vadd.f32 0.0, %v411
    %v413 = vpop.f32.mrf.mxu0
    %v414 = vadd.f32 0.0, %v413
    %415 = vdwg.mxu0
    %v416 = vrcp.pop %v377
    %v417 = vrcp.pop %v380
    %v418 = vrcp.pop %v383
    %v419 = vrcp.pop %v386
    %v420 = vmul.f32 %v407, %v416
    %v421 = vmul.f32 %v409, %v417
    %v422 = vmul.f32 %v412, %v418
    %v423 = vmul.f32 %v414, %v419
    %v424 = vld [vmem:[%s10] sm:$0xf]
    %v425 = vpack.c.bf16 %v421, %v420
    %v426 = vpack.c.bf16 %v423, %v422
    %s427 = scalar_lea.vmem %s4, 16
    %v428 = vld [vmem:[%s427] sm:$0xf]
    %v429 = vld [vmem:[%s427 + $0x4] sm:$0xf]
    %v430 = vld [vmem:[%s427 + $0x8] sm:$0xf]
    %v431 = vld [vmem:[%s427 + $0xc] sm:$0xf]
    %s432 = scalar_lea.vmem %s5, 1
    %v433 = vld [vmem:[%s432] sm:$0x1]
    %v435 = vperm.slane %v433, 0
    %v441 = vunpack.c.l.b16 %v428
    %v442 = vunpack.c.l.b16 %v429
    %v443 = vunpack.c.l.b16 %v430
    %v444 = vunpack.c.l.b16 %v431
    %v445 = vpack.c.b16 %v442, %v441
    %v446 = vpack.c.b16 %v444, %v443
    %449 = vmatpush.bf16.msra.mxu0 0
    %450 = vmatpush.bf16.msra.mxu0 0
    %451 = vmatpush.bf16.msra.mxu0 0
    %452 = vmatpush.bf16.msra.mxu0 0
    %453 = vmatpush.bf16.msra.mxu0 0
    %454 = vmatpush.bf16.msra.mxu0 0
    %455 = vmatpush.bf16.msra.mxu0 %v446
    %456 = vmatpush.bf16.msra.mxu0 %v445
    %457 = vmatmul.bf16.gmra.mxu0 %v213
    %v458 = vpop.f32.mrf.mxu0
    %v459 = vadd.f32 %v435, %v458
    %v460 = vpop.f32.mrf.mxu0
    %v461 = vadd.f32 %v435, %v460
    %462 = vmatmul.bf16.gmra.mxu0 %v216
    %v463 = vpop.f32.mrf.mxu0
    %v464 = vadd.f32 %v435, %v463
    %v465 = vpop.f32.mrf.mxu0
    %v466 = vadd.f32 %v435, %v465
    %467 = vdwg.mxu0
    %s468 = scalar_lea.vmem %s6, 16
    %v469 = vld [vmem:[%s468] sm:$0xf]
    %v470 = vld [vmem:[%s468 + $0x4] sm:$0xf]
    %v471 = vld [vmem:[%s468 + $0x8] sm:$0xf]
    %v472 = vld [vmem:[%s468 + $0xc] sm:$0xf]
    %s473 = scalar_lea.vmem %s7, 1
    %v474 = vld [vmem:[%s473] sm:$0x1]
    %v476 = vperm.slane %v474, 0
    %v482 = vunpack.c.l.b16 %v469
    %v483 = vunpack.c.l.b16 %v470
    %v484 = vunpack.c.l.b16 %v471
    %v485 = vunpack.c.l.b16 %v472
    %v486 = vpack.c.b16 %v483, %v482
    %v487 = vpack.c.b16 %v485, %v484
    %490 = vmatpush.bf16.msra.mxu0 0
    %491 = vmatpush.bf16.msra.mxu0 0
    %492 = vmatpush.bf16.msra.mxu0 0
    %493 = vmatpush.bf16.msra.mxu0 0
    %494 = vmatpush.bf16.msra.mxu0 0
    %495 = vmatpush.bf16.msra.mxu0 0
    %496 = vmatpush.bf16.msra.mxu0 %v487
    %497 = vmatpush.bf16.msra.mxu0 %v486
    %498 = vmatmul.bf16.gmra.mxu0 %v213
    %v499 = vpop.f32.mrf.mxu0
    %v500 = vadd.f32 %v476, %v499
    %v501 = vpop.f32.mrf.mxu0
    %v502 = vadd.f32 %v476, %v501
    %503 = vmatmul.bf16.gmra.mxu0 %v216
    %v504 = vpop.f32.mrf.mxu0
    %v505 = vadd.f32 %v476, %v504
    %v506 = vpop.f32.mrf.mxu0
    %v507 = vadd.f32 %v476, %v506
    %508 = vdwg.mxu0
    %s509 = scalar_lea.vmem %s8, 16
    %v510 = vld [vmem:[%s509] sm:$0xf]
    %v511 = vld [vmem:[%s509 + $0x4] sm:$0xf]
    %v512 = vld [vmem:[%s509 + $0x8] sm:$0xf]
    %v513 = vld [vmem:[%s509 + $0xc] sm:$0xf]
    %s514 = scalar_lea.vmem %s9, 1
    %v515 = vld [vmem:[%s514] sm:$0x1]
    %v517 = vperm.slane %v515, 0
    %v523 = vunpack.c.l.b16 %v510
    %v524 = vunpack.c.l.b16 %v511
    %v525 = vunpack.c.l.b16 %v512
    %v526 = vunpack.c.l.b16 %v513
    %v527 = vpack.c.b16 %v524, %v523
    %v528 = vpack.c.b16 %v526, %v525
    %531 = vmatpush.bf16.msra.mxu0 0
    %532 = vmatpush.bf16.msra.mxu0 0
    %533 = vmatpush.bf16.msra.mxu0 0
    %534 = vmatpush.bf16.msra.mxu0 0
    %535 = vmatpush.bf16.msra.mxu0 0
    %536 = vmatpush.bf16.msra.mxu0 0
    %537 = vmatpush.bf16.msra.mxu0 %v528
    %538 = vmatpush.bf16.msra.mxu0 %v527
    %539 = vmatmul.bf16.gmra.mxu0 %v213
    %v540 = vpop.f32.mrf.mxu0
    %v541 = vadd.f32 %v517, %v540
    %v542 = vpop.f32.mrf.mxu0
    %v543 = vadd.f32 %v517, %v542
    %544 = vmatmul.bf16.gmra.mxu0 %v216
    %v545 = vpop.f32.mrf.mxu0
    %v546 = vadd.f32 %v517, %v545
    %v547 = vpop.f32.mrf.mxu0
    %v548 = vadd.f32 %v517, %v547
    %549 = vdwg.mxu0
    %v550 = vpack.c.bf16 %v461, %v459
    %v551 = vpack.c.bf16 %v466, %v464
    %v552 = vpack.c.bf16 %v502, %v500
    %v553 = vpack.c.bf16 %v507, %v505
    %v555 = vsel %vm319, %v550, 0
    %v558 = vsel %vm319, %v551, 0
    %v561 = vsel %vm319, %v552, 0
    %v564 = vsel %vm319, %v553, 0
    %566 = vmatpush.bf16.xpose.msra.mxu0 0
    %567 = vmatpush.bf16.xpose.msra.mxu0 0
    %568 = vmatpush.bf16.xpose.msra.mxu0 0
    %569 = vmatpush.bf16.xpose.msra.mxu0 0
    %570 = vmatpush.bf16.xpose.msra.mxu0 0
    %571 = vmatpush.bf16.xpose.msra.mxu0 0
    %572 = vmatpush.bf16.xpose.msra.mxu0 %v564
    %573 = vmatpush.bf16.xpose.msra.mxu0 %v561
    %574 = vmatmul.bf16.gmra.mxu0 %v555
    %v575 = vpop.f32.mrf.mxu0
    %v576 = vadd.f32 %v74, %v575
    %v577 = vpop.f32.mrf.mxu0
    %v578 = vadd.f32 %v75, %v577
    %579 = vmatmul.bf16.gmra.mxu0 %v558
    %v580 = vpop.f32.mrf.mxu0
    %v581 = vadd.f32 %v76, %v580
    %v582 = vpop.f32.mrf.mxu0
    %v583 = vadd.f32 %v77, %v582
    %584 = vdwg.mxu0
    %v585 = vsel %vm80, %v576, -inf
    %586 = vmax.xlane.f32.xlu0 %v585
    %v587 = vpop.xlane.xlu0 %586
    %v588 = vsel %vm80, %v578, -inf
    %589 = vmax.xlane.f32.xlu0 %v588
    %v590 = vpop.xlane.xlu0 %589
    %v591 = vsel %vm80, %v581, -inf
    %592 = vmax.xlane.f32.xlu0 %v591
    %v593 = vpop.xlane.xlu0 %592
    %v594 = vsel %vm80, %v583, -inf
    %595 = vmax.xlane.f32.xlu0 %v594
    %v596 = vpop.xlane.xlu0 %595
    %v597 = vsub.f32 %v576, %v587
    %v598 = vsub.f32 %v578, %v590
    %v599 = vsub.f32 %v581, %v593
    %v600 = vsub.f32 %v583, %v596
    %v601 = vmul.f32 %v597, 1.442695
    %v602 = vpow.pop %v601
    %v603 = vmul.f32 %v598, 1.442695
    %v604 = vpow.pop %v603
    %v605 = vmul.f32 %v599, 1.442695
    %v606 = vpow.pop %v605
    %v607 = vmul.f32 %v600, 1.442695
    %v608 = vpow.pop %v607
    %v609 = vsel %vm80, %v602, 0.0
    %610 = vadd.xlane.f32.xlu0 %v609
    %v611 = vpop.xlane.xlu0 %610
    %v612 = vsel %vm80, %v604, 0.0
    %613 = vadd.xlane.f32.xlu0 %v612
    %v614 = vpop.xlane.xlu0 %613
    %v615 = vsel %vm80, %v606, 0.0
    %616 = vadd.xlane.f32.xlu0 %v615
    %v617 = vpop.xlane.xlu0 %616
    %v618 = vsel %vm80, %v608, 0.0
    %619 = vadd.xlane.f32.xlu0 %v618
    %v620 = vpop.xlane.xlu0 %619
    %v621 = vpack.c.bf16 %v604, %v602
    %v622 = vpack.c.bf16 %v608, %v606
    %v623 = vpack.c.bf16 %v543, %v541
    %v624 = vpack.c.bf16 %v548, %v546
    %v626 = vsel %vm80, %v621, 0
    %v629 = vsel %vm80, %v622, 0
    %631 = vmatpush.bf16.msra.mxu0 0
    %632 = vmatpush.bf16.msra.mxu0 0
    %633 = vmatpush.bf16.msra.mxu0 0
    %634 = vmatpush.bf16.msra.mxu0 0
    %635 = vmatpush.bf16.msra.mxu0 0
    %636 = vmatpush.bf16.msra.mxu0 0
    %637 = vmatpush.bf16.msra.mxu0 %v624
    %638 = vmatpush.bf16.msra.mxu0 %v623
    %639 = vmatmul.bf16.gmra.mxu0 %v626
    %v640 = vpop.f32.mrf.mxu0
    %v641 = vadd.f32 0.0, %v640
    %v642 = vpop.f32.mrf.mxu0
    %v643 = vadd.f32 0.0, %v642
    %644 = vmatmul.bf16.gmra.mxu0 %v629
    %v645 = vpop.f32.mrf.mxu0
    %v646 = vadd.f32 0.0, %v645
    %v647 = vpop.f32.mrf.mxu0
    %v648 = vadd.f32 0.0, %v647
    %649 = vdwg.mxu0
    %v650 = vrcp.pop %v611
    %v651 = vrcp.pop %v614
    %v652 = vrcp.pop %v617
    %v653 = vrcp.pop %v620
    %v654 = vmul.f32 %v641, %v650
    %v655 = vmul.f32 %v643, %v651
    %v656 = vmul.f32 %v646, %v652
    %v657 = vmul.f32 %v648, %v653
    %s658 = scalar_lea.vmem %s10, 4
    %v659 = vld [vmem:[%s658] sm:$0xf]
    %v660 = vpack.c.bf16 %v655, %v654
    %v661 = vpack.c.bf16 %v657, %v656
    %v663 = vsel %vm319, %v660, 0
    %v666 = vsel %vm319, %v661, 0
    %vm668 = vcmask 1043456
    %v670 = vsel %vm668, %v659, 0
    %672 = vmatpush.bf16.msra.mxu0 0
    %673 = vmatpush.bf16.msra.mxu0 0
    %674 = vmatpush.bf16.msra.mxu0 0
    %675 = vmatpush.bf16.msra.mxu0 0
    %676 = vmatpush.bf16.msra.mxu0 0
    %677 = vmatpush.bf16.msra.mxu0 0
    %678 = vmatpush.bf16.msra.mxu0 0
    %679 = vmatpush.bf16.msra.mxu0 %v670
    %680 = vmatmul.bf16.gmra.mxu0 %v663
    %v681 = vpop.f32.mrf.mxu0
    %v682 = vadd.f32 0.0, %v681
    %v683 = vpop.f32.mrf.mxu0
    %v684 = vadd.f32 0.0, %v683
    %685 = vmatmul.bf16.gmra.mxu0 %v666
    %v686 = vpop.f32.mrf.mxu0
    %v687 = vadd.f32 0.0, %v686
    %v688 = vpop.f32.mrf.mxu0
    %v689 = vadd.f32 0.0, %v688
    %690 = vdwg.mxu0
    %v692 = vsel %vm319, %v425, 0
    %v695 = vsel %vm319, %v426, 0
    %v698 = vsel %vm668, %v424, 0
    %700 = vmatpush.bf16.msra.mxu0 0
    %701 = vmatpush.bf16.msra.mxu0 0
    %702 = vmatpush.bf16.msra.mxu0 0
    %703 = vmatpush.bf16.msra.mxu0 0
    %704 = vmatpush.bf16.msra.mxu0 0
    %705 = vmatpush.bf16.msra.mxu0 0
    %706 = vmatpush.bf16.msra.mxu0 0
    %707 = vmatpush.bf16.msra.mxu0 %v698
    %708 = vmatmul.bf16.gmra.mxu0 %v692
    %v709 = vpop.f32.mrf.mxu0
    %v710 = vadd.f32 %v682, %v709
    %v711 = vpop.f32.mrf.mxu0
    %v712 = vadd.f32 %v684, %v711
    %713 = vmatmul.bf16.gmra.mxu0 %v695
    %v714 = vpop.f32.mrf.mxu0
    %v715 = vadd.f32 %v687, %v714
    %v716 = vpop.f32.mrf.mxu0
    %v717 = vadd.f32 %v689, %v716
    %718 = vdwg.mxu0
    %s719 = scalar_lea.vmem %s4, 32
    %v720 = vld [vmem:[%s719] sm:$0xf]
    %v721 = vld [vmem:[%s719 + $0x4] sm:$0xf]
    %v722 = vld [vmem:[%s719 + $0x8] sm:$0xf]
    %v723 = vld [vmem:[%s719 + $0xc] sm:$0xf]
    %s724 = scalar_lea.vmem %s5, 2
    %v725 = vld [vmem:[%s724] sm:$0x1]
    %v727 = vperm.slane %v725, 0
    %v733 = vunpack.c.l.b16 %v720
    %v734 = vunpack.c.l.b16 %v721
    %v735 = vunpack.c.l.b16 %v722
    %v736 = vunpack.c.l.b16 %v723
    %v737 = vpack.c.b16 %v734, %v733
    %v738 = vpack.c.b16 %v736, %v735
    %741 = vmatpush.bf16.msra.mxu0 0
    %742 = vmatpush.bf16.msra.mxu0 0
    %743 = vmatpush.bf16.msra.mxu0 0
    %744 = vmatpush.bf16.msra.mxu0 0
    %745 = vmatpush.bf16.msra.mxu0 0
    %746 = vmatpush.bf16.msra.mxu0 0
    %747 = vmatpush.bf16.msra.mxu0 %v738
    %748 = vmatpush.bf16.msra.mxu0 %v737
    %749 = vmatmul.bf16.gmra.mxu0 %v213
    %v750 = vpop.f32.mrf.mxu0
    %v751 = vadd.f32 %v727, %v750
    %v752 = vpop.f32.mrf.mxu0
    %v753 = vadd.f32 %v727, %v752
    %754 = vmatmul.bf16.gmra.mxu0 %v216
    %v755 = vpop.f32.mrf.mxu0
    %v756 = vadd.f32 %v727, %v755
    %v757 = vpop.f32.mrf.mxu0
    %v758 = vadd.f32 %v727, %v757
    %759 = vdwg.mxu0
    %s760 = scalar_lea.vmem %s6, 32
    %v761 = vld [vmem:[%s760] sm:$0xf]
    %v762 = vld [vmem:[%s760 + $0x4] sm:$0xf]
    %v763 = vld [vmem:[%s760 + $0x8] sm:$0xf]
    %v764 = vld [vmem:[%s760 + $0xc] sm:$0xf]
    %s765 = scalar_lea.vmem %s7, 2
    %v766 = vld [vmem:[%s765] sm:$0x1]
    %v768 = vperm.slane %v766, 0
    %v774 = vunpack.c.l.b16 %v761
    %v775 = vunpack.c.l.b16 %v762
    %v776 = vunpack.c.l.b16 %v763
    %v777 = vunpack.c.l.b16 %v764
    %v778 = vpack.c.b16 %v775, %v774
    %v779 = vpack.c.b16 %v777, %v776
    %782 = vmatpush.bf16.msra.mxu0 0
    %783 = vmatpush.bf16.msra.mxu0 0
    %784 = vmatpush.bf16.msra.mxu0 0
    %785 = vmatpush.bf16.msra.mxu0 0
    %786 = vmatpush.bf16.msra.mxu0 0
    %787 = vmatpush.bf16.msra.mxu0 0
    %788 = vmatpush.bf16.msra.mxu0 %v779
    %789 = vmatpush.bf16.msra.mxu0 %v778
    %790 = vmatmul.bf16.gmra.mxu0 %v213
    %v791 = vpop.f32.mrf.mxu0
    %v792 = vadd.f32 %v768, %v791
    %v793 = vpop.f32.mrf.mxu0
    %v794 = vadd.f32 %v768, %v793
    %795 = vmatmul.bf16.gmra.mxu0 %v216
    %v796 = vpop.f32.mrf.mxu0
    %v797 = vadd.f32 %v768, %v796
    %v798 = vpop.f32.mrf.mxu0
    %v799 = vadd.f32 %v768, %v798
    %800 = vdwg.mxu0
    %s801 = scalar_lea.vmem %s8, 32
    %v802 = vld [vmem:[%s801] sm:$0xf]
    %v803 = vld [vmem:[%s801 + $0x4] sm:$0xf]
    %v804 = vld [vmem:[%s801 + $0x8] sm:$0xf]
    %v805 = vld [vmem:[%s801 + $0xc] sm:$0xf]
    %s806 = scalar_lea.vmem %s9, 2
    %v807 = vld [vmem:[%s806] sm:$0x1]
    %v809 = vperm.slane %v807, 0
    %v815 = vunpack.c.l.b16 %v802
    %v816 = vunpack.c.l.b16 %v803
    %v817 = vunpack.c.l.b16 %v804
    %v818 = vunpack.c.l.b16 %v805
    %v819 = vpack.c.b16 %v816, %v815
    %v820 = vpack.c.b16 %v818, %v817
    %823 = vmatpush.bf16.msra.mxu0 0
    %824 = vmatpush.bf16.msra.mxu0 0
    %825 = vmatpush.bf16.msra.mxu0 0
    %826 = vmatpush.bf16.msra.mxu0 0
    %827 = vmatpush.bf16.msra.mxu0 0
    %828 = vmatpush.bf16.msra.mxu0 0
    %829 = vmatpush.bf16.msra.mxu0 %v820
    %830 = vmatpush.bf16.msra.mxu0 %v819
    %831 = vmatmul.bf16.gmra.mxu0 %v213
    %v832 = vpop.f32.mrf.mxu0
    %v833 = vadd.f32 %v809, %v832
    %v834 = vpop.f32.mrf.mxu0
    %v835 = vadd.f32 %v809, %v834
    %836 = vmatmul.bf16.gmra.mxu0 %v216
    %v837 = vpop.f32.mrf.mxu0
    %v838 = vadd.f32 %v809, %v837
    %v839 = vpop.f32.mrf.mxu0
    %v840 = vadd.f32 %v809, %v839
    %841 = vdwg.mxu0
    %v842 = vpack.c.bf16 %v753, %v751
    %v843 = vpack.c.bf16 %v758, %v756
    %v844 = vpack.c.bf16 %v794, %v792
    %v845 = vpack.c.bf16 %v799, %v797
    %v847 = vsel %vm319, %v842, 0
    %v850 = vsel %vm319, %v843, 0
    %v853 = vsel %vm319, %v844, 0
    %v856 = vsel %vm319, %v845, 0
    %858 = vmatpush.bf16.xpose.msra.mxu0 0
    %859 = vmatpush.bf16.xpose.msra.mxu0 0
    %860 = vmatpush.bf16.xpose.msra.mxu0 0
    %861 = vmatpush.bf16.xpose.msra.mxu0 0
    %862 = vmatpush.bf16.xpose.msra.mxu0 0
    %863 = vmatpush.bf16.xpose.msra.mxu0 0
    %864 = vmatpush.bf16.xpose.msra.mxu0 %v856
    %865 = vmatpush.bf16.xpose.msra.mxu0 %v853
    %866 = vmatmul.bf16.gmra.mxu0 %v847
    %v867 = vpop.f32.mrf.mxu0
    %v868 = vadd.f32 %v74, %v867
    %v869 = vpop.f32.mrf.mxu0
    %v870 = vadd.f32 %v75, %v869
    %871 = vmatmul.bf16.gmra.mxu0 %v850
    %v872 = vpop.f32.mrf.mxu0
    %v873 = vadd.f32 %v76, %v872
    %v874 = vpop.f32.mrf.mxu0
    %v875 = vadd.f32 %v77, %v874
    %876 = vdwg.mxu0
    %v877 = vsel %vm80, %v868, -inf
    %878 = vmax.xlane.f32.xlu0 %v877
    %v879 = vpop.xlane.xlu0 %878
    %v880 = vsel %vm80, %v870, -inf
    %881 = vmax.xlane.f32.xlu0 %v880
    %v882 = vpop.xlane.xlu0 %881
    %v883 = vsel %vm80, %v873, -inf
    %884 = vmax.xlane.f32.xlu0 %v883
    %v885 = vpop.xlane.xlu0 %884
    %v886 = vsel %vm80, %v875, -inf
    %887 = vmax.xlane.f32.xlu0 %v886
    %v888 = vpop.xlane.xlu0 %887
    %v889 = vsub.f32 %v868, %v879
    %v890 = vsub.f32 %v870, %v882
    %v891 = vsub.f32 %v873, %v885
    %v892 = vsub.f32 %v875, %v888
    %v893 = vmul.f32 %v889, 1.442695
    %v894 = vpow.pop %v893
    %v895 = vmul.f32 %v890, 1.442695
    %v896 = vpow.pop %v895
    %v897 = vmul.f32 %v891, 1.442695
    %v898 = vpow.pop %v897
    %v899 = vmul.f32 %v892, 1.442695
    %v900 = vpow.pop %v899
    %v901 = vsel %vm80, %v894, 0.0
    %902 = vadd.xlane.f32.xlu0 %v901
    %v903 = vpop.xlane.xlu0 %902
    %v904 = vsel %vm80, %v896, 0.0
    %905 = vadd.xlane.f32.xlu0 %v904
    %v906 = vpop.xlane.xlu0 %905
    %v907 = vsel %vm80, %v898, 0.0
    %908 = vadd.xlane.f32.xlu0 %v907
    %v909 = vpop.xlane.xlu0 %908
    %v910 = vsel %vm80, %v900, 0.0
    %911 = vadd.xlane.f32.xlu0 %v910
    %v912 = vpop.xlane.xlu0 %911
    %v913 = vpack.c.bf16 %v896, %v894
    %v914 = vpack.c.bf16 %v900, %v898
    %v915 = vpack.c.bf16 %v835, %v833
    %v916 = vpack.c.bf16 %v840, %v838
    %v918 = vsel %vm80, %v913, 0
    %v921 = vsel %vm80, %v914, 0
    %923 = vmatpush.bf16.msra.mxu0 0
    %924 = vmatpush.bf16.msra.mxu0 0
    %925 = vmatpush.bf16.msra.mxu0 0
    %926 = vmatpush.bf16.msra.mxu0 0
    %927 = vmatpush.bf16.msra.mxu0 0
    %928 = vmatpush.bf16.msra.mxu0 0
    %929 = vmatpush.bf16.msra.mxu0 %v916
    %930 = vmatpush.bf16.msra.mxu0 %v915
    %931 = vmatmul.bf16.gmra.mxu0 %v918
    %v932 = vpop.f32.mrf.mxu0
    %v933 = vadd.f32 0.0, %v932
    %v934 = vpop.f32.mrf.mxu0
    %v935 = vadd.f32 0.0, %v934
    %936 = vmatmul.bf16.gmra.mxu0 %v921
    %v937 = vpop.f32.mrf.mxu0
    %v938 = vadd.f32 0.0, %v937
    %v939 = vpop.f32.mrf.mxu0
    %v940 = vadd.f32 0.0, %v939
    %941 = vdwg.mxu0
    %v942 = vrcp.pop %v903
    %v943 = vrcp.pop %v906
    %v944 = vrcp.pop %v909
    %v945 = vrcp.pop %v912
    %v946 = vmul.f32 %v933, %v942
    %v947 = vmul.f32 %v935, %v943
    %v948 = vmul.f32 %v938, %v944
    %v949 = vmul.f32 %v940, %v945
    %s950 = scalar_lea.vmem %s10, 8
    %v951 = vld [vmem:[%s950] sm:$0xf]
    %v952 = vpack.c.bf16 %v947, %v946
    %v953 = vpack.c.bf16 %v949, %v948
    %v955 = vsel %vm319, %v952, 0
    %v958 = vsel %vm319, %v953, 0
    %v961 = vsel %vm668, %v951, 0
    %963 = vmatpush.bf16.msra.mxu0 0
    %964 = vmatpush.bf16.msra.mxu0 0
    %965 = vmatpush.bf16.msra.mxu0 0
    %966 = vmatpush.bf16.msra.mxu0 0
    %967 = vmatpush.bf16.msra.mxu0 0
    %968 = vmatpush.bf16.msra.mxu0 0
    %969 = vmatpush.bf16.msra.mxu0 0
    %970 = vmatpush.bf16.msra.mxu0 %v961
    %971 = vmatmul.bf16.gmra.mxu0 %v955
    %v972 = vpop.f32.mrf.mxu0
    %v973 = vadd.f32 0.0, %v972
    %v974 = vpop.f32.mrf.mxu0
    %v975 = vadd.f32 0.0, %v974
    %976 = vmatmul.bf16.gmra.mxu0 %v958
    %v977 = vpop.f32.mrf.mxu0
    %v978 = vadd.f32 0.0, %v977
    %v979 = vpop.f32.mrf.mxu0
    %v980 = vadd.f32 0.0, %v979
    %981 = vdwg.mxu0
    %v982 = vadd.f32 %v710, %v973
    %v983 = vadd.f32 %v712, %v975
    %v984 = vadd.f32 %v715, %v978
    %v985 = vadd.f32 %v717, %v980
    %s986 = scalar_lea.vmem %s4, 48
    %v987 = vld [vmem:[%s986] sm:$0xf]
    %v988 = vld [vmem:[%s986 + $0x4] sm:$0xf]
    %v989 = vld [vmem:[%s986 + $0x8] sm:$0xf]
    %v990 = vld [vmem:[%s986 + $0xc] sm:$0xf]
    %s991 = scalar_lea.vmem %s5, 3
    %v992 = vld [vmem:[%s991] sm:$0x1]
    %v994 = vperm.slane %v992, 0
    %v1000 = vunpack.c.l.b16 %v987
    %v1001 = vunpack.c.l.b16 %v988
    %v1002 = vunpack.c.l.b16 %v989
    %v1003 = vunpack.c.l.b16 %v990
    %v1004 = vpack.c.b16 %v1001, %v1000
    %v1005 = vpack.c.b16 %v1003, %v1002
    %1008 = vmatpush.bf16.msra.mxu0 0
    %1009 = vmatpush.bf16.msra.mxu0 0
    %1010 = vmatpush.bf16.msra.mxu0 0
    %1011 = vmatpush.bf16.msra.mxu0 0
    %1012 = vmatpush.bf16.msra.mxu0 0
    %1013 = vmatpush.bf16.msra.mxu0 0
    %1014 = vmatpush.bf16.msra.mxu0 %v1005
    %1015 = vmatpush.bf16.msra.mxu0 %v1004
    %1016 = vmatmul.bf16.gmra.mxu0 %v213
    %v1017 = vpop.f32.mrf.mxu0
    %v1018 = vadd.f32 %v994, %v1017
    %v1019 = vpop.f32.mrf.mxu0
    %v1020 = vadd.f32 %v994, %v1019
    %1021 = vmatmul.bf16.gmra.mxu0 %v216
    %v1022 = vpop.f32.mrf.mxu0
    %v1023 = vadd.f32 %v994, %v1022
    %v1024 = vpop.f32.mrf.mxu0
    %v1025 = vadd.f32 %v994, %v1024
    %1026 = vdwg.mxu0
    %s1027 = scalar_lea.vmem %s6, 48
    %v1028 = vld [vmem:[%s1027] sm:$0xf]
    %v1029 = vld [vmem:[%s1027 + $0x4] sm:$0xf]
    %v1030 = vld [vmem:[%s1027 + $0x8] sm:$0xf]
    %v1031 = vld [vmem:[%s1027 + $0xc] sm:$0xf]
    %s1032 = scalar_lea.vmem %s7, 3
    %v1033 = vld [vmem:[%s1032] sm:$0x1]
    %v1035 = vperm.slane %v1033, 0
    %v1041 = vunpack.c.l.b16 %v1028
    %v1042 = vunpack.c.l.b16 %v1029
    %v1043 = vunpack.c.l.b16 %v1030
    %v1044 = vunpack.c.l.b16 %v1031
    %v1045 = vpack.c.b16 %v1042, %v1041
    %v1046 = vpack.c.b16 %v1044, %v1043
    %1049 = vmatpush.bf16.msra.mxu0 0
    %1050 = vmatpush.bf16.msra.mxu0 0
    %1051 = vmatpush.bf16.msra.mxu0 0
    %1052 = vmatpush.bf16.msra.mxu0 0
    %1053 = vmatpush.bf16.msra.mxu0 0
    %1054 = vmatpush.bf16.msra.mxu0 0
    %1055 = vmatpush.bf16.msra.mxu0 %v1046
    %1056 = vmatpush.bf16.msra.mxu0 %v1045
    %1057 = vmatmul.bf16.gmra.mxu0 %v213
    %v1058 = vpop.f32.mrf.mxu0
    %v1059 = vadd.f32 %v1035, %v1058
    %v1060 = vpop.f32.mrf.mxu0
    %v1061 = vadd.f32 %v1035, %v1060
    %1062 = vmatmul.bf16.gmra.mxu0 %v216
    %v1063 = vpop.f32.mrf.mxu0
    %v1064 = vadd.f32 %v1035, %v1063
    %v1065 = vpop.f32.mrf.mxu0
    %v1066 = vadd.f32 %v1035, %v1065
    %1067 = vdwg.mxu0
    %s1068 = scalar_lea.vmem %s8, 48
    %v1069 = vld [vmem:[%s1068] sm:$0xf]
    %v1070 = vld [vmem:[%s1068 + $0x4] sm:$0xf]
    %v1071 = vld [vmem:[%s1068 + $0x8] sm:$0xf]
    %v1072 = vld [vmem:[%s1068 + $0xc] sm:$0xf]
    %s1073 = scalar_lea.vmem %s9, 3
    %v1074 = vld [vmem:[%s1073] sm:$0x1]
    %v1076 = vperm.slane %v1074, 0
    %v1082 = vunpack.c.l.b16 %v1069
    %v1083 = vunpack.c.l.b16 %v1070
    %v1084 = vunpack.c.l.b16 %v1071
    %v1085 = vunpack.c.l.b16 %v1072
    %v1086 = vpack.c.b16 %v1083, %v1082
    %v1087 = vpack.c.b16 %v1085, %v1084
    %1090 = vmatpush.bf16.msra.mxu0 0
    %1091 = vmatpush.bf16.msra.mxu0 0
    %1092 = vmatpush.bf16.msra.mxu0 0
    %1093 = vmatpush.bf16.msra.mxu0 0
    %1094 = vmatpush.bf16.msra.mxu0 0
    %1095 = vmatpush.bf16.msra.mxu0 0
    %1096 = vmatpush.bf16.msra.mxu0 %v1087
    %1097 = vmatpush.bf16.msra.mxu0 %v1086
    %1098 = vmatmul.bf16.gmra.mxu0 %v213
    %v1099 = vpop.f32.mrf.mxu0
    %v1100 = vadd.f32 %v1076, %v1099
    %v1101 = vpop.f32.mrf.mxu0
    %v1102 = vadd.f32 %v1076, %v1101
    %1103 = vmatmul.bf16.gmra.mxu0 %v216
    %v1104 = vpop.f32.mrf.mxu0
    %v1105 = vadd.f32 %v1076, %v1104
    %v1106 = vpop.f32.mrf.mxu0
    %v1107 = vadd.f32 %v1076, %v1106
    %1108 = vdwg.mxu0
    %v1109 = vpack.c.bf16 %v1020, %v1018
    %v1110 = vpack.c.bf16 %v1025, %v1023
    %v1111 = vpack.c.bf16 %v1061, %v1059
    %v1112 = vpack.c.bf16 %v1066, %v1064
    %v1114 = vsel %vm319, %v1109, 0
    %v1117 = vsel %vm319, %v1110, 0
    %v1120 = vsel %vm319, %v1111, 0
    %v1123 = vsel %vm319, %v1112, 0
    %1125 = vmatpush.bf16.xpose.msra.mxu0 0
    %1126 = vmatpush.bf16.xpose.msra.mxu0 0
    %1127 = vmatpush.bf16.xpose.msra.mxu0 0
    %1128 = vmatpush.bf16.xpose.msra.mxu0 0
    %1129 = vmatpush.bf16.xpose.msra.mxu0 0
    %1130 = vmatpush.bf16.xpose.msra.mxu0 0
    %1131 = vmatpush.bf16.xpose.msra.mxu0 %v1123
    %1132 = vmatpush.bf16.xpose.msra.mxu0 %v1120
    %1133 = vmatmul.bf16.gmra.mxu0 %v1114
    %v1134 = vpop.f32.mrf.mxu0
    %v1135 = vadd.f32 %v74, %v1134
    %v1136 = vpop.f32.mrf.mxu0
    %v1137 = vadd.f32 %v75, %v1136
    %1138 = vmatmul.bf16.gmra.mxu0 %v1117
    %v1139 = vpop.f32.mrf.mxu0
    %v1140 = vadd.f32 %v76, %v1139
    %v1141 = vpop.f32.mrf.mxu0
    %v1142 = vadd.f32 %v77, %v1141
    %1143 = vdwg.mxu0
    %v1144 = vsel %vm80, %v1135, -inf
    %1145 = vmax.xlane.f32.xlu0 %v1144
    %v1146 = vpop.xlane.xlu0 %1145
    %v1147 = vsel %vm80, %v1137, -inf
    %1148 = vmax.xlane.f32.xlu0 %v1147
    %v1149 = vpop.xlane.xlu0 %1148
    %v1150 = vsel %vm80, %v1140, -inf
    %1151 = vmax.xlane.f32.xlu0 %v1150
    %v1152 = vpop.xlane.xlu0 %1151
    %v1153 = vsel %vm80, %v1142, -inf
    %1154 = vmax.xlane.f32.xlu0 %v1153
    %v1155 = vpop.xlane.xlu0 %1154
    %v1156 = vsub.f32 %v1135, %v1146
    %v1157 = vsub.f32 %v1137, %v1149
    %v1158 = vsub.f32 %v1140, %v1152
    %v1159 = vsub.f32 %v1142, %v1155
    %v1160 = vmul.f32 %v1156, 1.442695
    %v1161 = vpow.pop %v1160
    %v1162 = vmul.f32 %v1157, 1.442695
    %v1163 = vpow.pop %v1162
    %v1164 = vmul.f32 %v1158, 1.442695
    %v1165 = vpow.pop %v1164
    %v1166 = vmul.f32 %v1159, 1.442695
    %v1167 = vpow.pop %v1166
    %v1168 = vsel %vm80, %v1161, 0.0
    %1169 = vadd.xlane.f32.xlu0 %v1168
    %v1170 = vpop.xlane.xlu0 %1169
    %v1171 = vsel %vm80, %v1163, 0.0
    %1172 = vadd.xlane.f32.xlu0 %v1171
    %v1173 = vpop.xlane.xlu0 %1172
    %v1174 = vsel %vm80, %v1165, 0.0
    %1175 = vadd.xlane.f32.xlu0 %v1174
    %v1176 = vpop.xlane.xlu0 %1175
    %v1177 = vsel %vm80, %v1167, 0.0
    %1178 = vadd.xlane.f32.xlu0 %v1177
    %v1179 = vpop.xlane.xlu0 %1178
    %v1180 = vpack.c.bf16 %v1163, %v1161
    %v1181 = vpack.c.bf16 %v1167, %v1165
    %v1182 = vpack.c.bf16 %v1102, %v1100
    %v1183 = vpack.c.bf16 %v1107, %v1105
    %v1185 = vsel %vm80, %v1180, 0
    %v1188 = vsel %vm80, %v1181, 0
    %1190 = vmatpush.bf16.msra.mxu0 0
    %1191 = vmatpush.bf16.msra.mxu0 0
    %1192 = vmatpush.bf16.msra.mxu0 0
    %1193 = vmatpush.bf16.msra.mxu0 0
    %1194 = vmatpush.bf16.msra.mxu0 0
    %1195 = vmatpush.bf16.msra.mxu0 0
    %1196 = vmatpush.bf16.msra.mxu0 %v1183
    %1197 = vmatpush.bf16.msra.mxu0 %v1182
    %1198 = vmatmul.bf16.gmra.mxu0 %v1185
    %v1199 = vpop.f32.mrf.mxu0
    %v1200 = vadd.f32 0.0, %v1199
    %v1201 = vpop.f32.mrf.mxu0
    %v1202 = vadd.f32 0.0, %v1201
    %1203 = vmatmul.bf16.gmra.mxu0 %v1188
    %v1204 = vpop.f32.mrf.mxu0
    %v1205 = vadd.f32 0.0, %v1204
    %v1206 = vpop.f32.mrf.mxu0
    %v1207 = vadd.f32 0.0, %v1206
    %1208 = vdwg.mxu0
    %v1209 = vrcp.pop %v1170
    %v1210 = vrcp.pop %v1173
    %v1211 = vrcp.pop %v1176
    %v1212 = vrcp.pop %v1179
    %v1213 = vmul.f32 %v1200, %v1209
    %v1214 = vmul.f32 %v1202, %v1210
    %v1215 = vmul.f32 %v1205, %v1211
    %v1216 = vmul.f32 %v1207, %v1212
    %s1217 = scalar_lea.vmem %s10, 12
    %v1218 = vld [vmem:[%s1217] sm:$0xf]
    %v1219 = vpack.c.bf16 %v1214, %v1213
    %v1220 = vpack.c.bf16 %v1216, %v1215
    %v1222 = vsel %vm319, %v1219, 0
    %v1225 = vsel %vm319, %v1220, 0
    %v1228 = vsel %vm668, %v1218, 0
    %1230 = vmatpush.bf16.msra.mxu0 0
    %1231 = vmatpush.bf16.msra.mxu0 0
    %1232 = vmatpush.bf16.msra.mxu0 0
    %1233 = vmatpush.bf16.msra.mxu0 0
    %1234 = vmatpush.bf16.msra.mxu0 0
    %1235 = vmatpush.bf16.msra.mxu0 0
    %1236 = vmatpush.bf16.msra.mxu0 0
    %1237 = vmatpush.bf16.msra.mxu0 %v1228
    %1238 = vmatmul.bf16.gmra.mxu0 %v1222
    %v1239 = vpop.f32.mrf.mxu0
    %v1240 = vadd.f32 0.0, %v1239
    %v1241 = vpop.f32.mrf.mxu0
    %v1242 = vadd.f32 0.0, %v1241
    %1243 = vmatmul.bf16.gmra.mxu0 %v1225
    %v1244 = vpop.f32.mrf.mxu0
    %v1245 = vadd.f32 0.0, %v1244
    %v1246 = vpop.f32.mrf.mxu0
    %v1247 = vadd.f32 0.0, %v1246
    %1248 = vdwg.mxu0
    %v1249 = vadd.f32 %v982, %v1240
    %v1250 = vadd.f32 %v983, %v1242
    %v1251 = vadd.f32 %v984, %v1245
    %v1252 = vadd.f32 %v985, %v1247
    %v1253 = vadd.f32 %v70, %v1249
    %v1254 = vadd.f32 %v71, %v1250
    %v1255 = vadd.f32 %v72, %v1251
    %v1256 = vadd.f32 %v73, %v1252
    %v1257 = vld [vmem:[%s11] sm:$0x1]
    %v1259 = vperm.slane %v1257, 0
    %v1261 = vadd.f32 %v1253, %v1259
    %v1262 = vadd.f32 %v1254, %v1259
    %v1263 = vadd.f32 %v1255, %v1259
    %v1264 = vadd.f32 %v1256, %v1259
    %v1265 = vld [vmem:[%s12] sm:$0x1]
    %v1266 = vld [vmem:[%s13] sm:$0x1]
    %v1267 = vsel %vm80, %v1261, 0.0
    %1268 = vadd.xlane.f32.xlu0 %v1267
    %v1269 = vpop.xlane.xlu0 %1268
    %v1270 = vsel %vm80, %v1262, 0.0
    %1271 = vadd.xlane.f32.xlu0 %v1270
    %v1272 = vpop.xlane.xlu0 %1271
    %v1273 = vsel %vm80, %v1263, 0.0
    %1274 = vadd.xlane.f32.xlu0 %v1273
    %v1275 = vpop.xlane.xlu0 %1274
    %v1276 = vsel %vm80, %v1264, 0.0
    %1277 = vadd.xlane.f32.xlu0 %v1276
    %v1278 = vpop.xlane.xlu0 %1277
    %v1279 = vmul.f32 %v1269, %v99
    %v1280 = vmul.f32 %v1272, %v99
    %v1281 = vmul.f32 %v1275, %v99
    %v1282 = vmul.f32 %v1278, %v99
    %v1283 = vsub.f32 %v1261, %v1279
    %v1284 = vsub.f32 %v1262, %v1280
    %v1285 = vsub.f32 %v1263, %v1281
    %v1286 = vsub.f32 %v1264, %v1282
    %v1287 = vmul.f32 %v1283, %v1283
    %v1288 = vmul.f32 %v1284, %v1284
    %v1289 = vmul.f32 %v1285, %v1285
    %v1290 = vmul.f32 %v1286, %v1286
    %v1291 = vsel %vm80, %v1287, 0.0
    %1292 = vadd.xlane.f32.xlu0 %v1291
    %v1293 = vpop.xlane.xlu0 %1292
    %v1294 = vsel %vm80, %v1288, 0.0
    %1295 = vadd.xlane.f32.xlu0 %v1294
    %v1296 = vpop.xlane.xlu0 %1295
    %v1297 = vsel %vm80, %v1289, 0.0
    %1298 = vadd.xlane.f32.xlu0 %v1297
    %v1299 = vpop.xlane.xlu0 %1298
    %v1300 = vsel %vm80, %v1290, 0.0
    %1301 = vadd.xlane.f32.xlu0 %v1300
    %v1302 = vpop.xlane.xlu0 %1301
    %v1303 = vmul.f32 %v1293, %v99
    %v1304 = vmul.f32 %v1296, %v99
    %v1305 = vmul.f32 %v1299, %v99
    %v1306 = vmul.f32 %v1302, %v99
    %v1307 = vadd.f32 %v1303, 1e-05
    %v1308 = vadd.f32 %v1304, 1e-05
    %v1309 = vadd.f32 %v1305, 1e-05
    %v1310 = vadd.f32 %v1306, 1e-05
    %v1311 = vrsqrt.pop %v1307
    %v1312 = vmul.f32 %v1311, %v1307
    %v1313 = vmul.f32 %v1312, %v1311
    %v1314 = vmul.f32 0.5, %v1313
    %v1315 = vsub.f32 1.5, %v1314
    %v1316 = vmul.f32 %v1311, %v1315
    %vm1317 = vweird.f32 %v1307
    %vm1318 = vweird.f32 %v1311
    %vm1319 = vmor %vm1317, %vm1318
    %v1320 = vsel %vm1319, %v1311, %v1316
    %v1321 = vrsqrt.pop %v1308
    %v1322 = vmul.f32 %v1321, %v1308
    %v1323 = vmul.f32 %v1322, %v1321
    %v1324 = vmul.f32 0.5, %v1323
    %v1325 = vsub.f32 1.5, %v1324
    %v1326 = vmul.f32 %v1321, %v1325
    %vm1327 = vweird.f32 %v1308
    %vm1328 = vweird.f32 %v1321
    %vm1329 = vmor %vm1327, %vm1328
    %v1330 = vsel %vm1329, %v1321, %v1326
    %v1331 = vrsqrt.pop %v1309
    %v1332 = vmul.f32 %v1331, %v1309
    %v1333 = vmul.f32 %v1332, %v1331
    %v1334 = vmul.f32 0.5, %v1333
    %v1335 = vsub.f32 1.5, %v1334
    %v1336 = vmul.f32 %v1331, %v1335
    %vm1337 = vweird.f32 %v1309
    %vm1338 = vweird.f32 %v1331
    %vm1339 = vmor %vm1337, %vm1338
    %v1340 = vsel %vm1339, %v1331, %v1336
    %v1341 = vrsqrt.pop %v1310
    %v1342 = vmul.f32 %v1341, %v1310
    %v1343 = vmul.f32 %v1342, %v1341
    %v1344 = vmul.f32 0.5, %v1343
    %v1345 = vsub.f32 1.5, %v1344
    %v1346 = vmul.f32 %v1341, %v1345
    %vm1347 = vweird.f32 %v1310
    %vm1348 = vweird.f32 %v1341
    %vm1349 = vmor %vm1347, %vm1348
    %v1350 = vsel %vm1349, %v1341, %v1346
    %v1351 = vmul.f32 %v1283, %v1320
    %v1352 = vmul.f32 %v1284, %v1330
    %v1353 = vmul.f32 %v1285, %v1340
    %v1354 = vmul.f32 %v1286, %v1350
    %v1356 = vperm.slane %v1265, 0
    %v1358 = vmul.f32 %v1351, %v1356
    %v1359 = vmul.f32 %v1352, %v1356
    %v1360 = vmul.f32 %v1353, %v1356
    %v1361 = vmul.f32 %v1354, %v1356
    %v1363 = vperm.slane %v1266, 0
    %v1365 = vadd.f32 %v1358, %v1363
    %v1366 = vadd.f32 %v1359, %v1363
    %v1367 = vadd.f32 %v1360, %v1363
    %v1368 = vadd.f32 %v1361, %v1363
    %v1369 = vld [vmem:[%s14] sm:$0xf]
    %v1370 = vld [vmem:[%s14 + $0x4] sm:$0xf]
    %v1371 = vld [vmem:[%s14 + $0x8] sm:$0xf]
    %v1372 = vld [vmem:[%s14 + $0xc] sm:$0xf]
    %v1373 = vpack.c.bf16 %v1366, %v1365
    %v1374 = vpack.c.bf16 %v1368, %v1367
    %v1375 = vld [vmem:[%s15] sm:$0x1]
    %v1377 = vperm.slane %v1375, 0
    %v1383 = vunpack.c.l.b16 %v1369
    %v1384 = vunpack.c.l.b16 %v1370
    %v1385 = vunpack.c.l.b16 %v1371
    %v1386 = vunpack.c.l.b16 %v1372
    %v1387 = vpack.c.b16 %v1384, %v1383
    %v1388 = vpack.c.b16 %v1386, %v1385
    %v1392 = vsel %vm80, %v1373, 0
    %v1395 = vsel %vm80, %v1374, 0
    %1397 = vmatpush.bf16.msra.mxu0 0
    %1398 = vmatpush.bf16.msra.mxu0 0
    %1399 = vmatpush.bf16.msra.mxu0 0
    %1400 = vmatpush.bf16.msra.mxu0 0
    %1401 = vmatpush.bf16.msra.mxu0 0
    %1402 = vmatpush.bf16.msra.mxu0 0
    %1403 = vmatpush.bf16.msra.mxu0 %v1388
    %1404 = vmatpush.bf16.msra.mxu0 %v1387
    %1405 = vmatmul.bf16.gmra.mxu0 %v1392
    %v1406 = vpop.f32.mrf.mxu0
    %v1407 = vadd.f32 %v1377, %v1406
    %v1408 = vpop.f32.mrf.mxu0
    %v1409 = vadd.f32 %v1377, %v1408
    %1410 = vmatmul.bf16.gmra.mxu0 %v1395
    %v1411 = vpop.f32.mrf.mxu0
    %v1412 = vadd.f32 %v1377, %v1411
    %v1413 = vpop.f32.mrf.mxu0
    %v1414 = vadd.f32 %v1377, %v1413
    %1415 = vdwg.mxu0
    %v1416 = vmul.f32 %v1407, 0.5
    %v1417 = vmul.f32 %v1409, 0.5
    %v1418 = vmul.f32 %v1412, 0.5
    %v1419 = vmul.f32 %v1414, 0.5
    %v1420 = vmul.f32 %v1407, 0.044715
    %v1421 = vmul.f32 %v1409, 0.044715
    %v1422 = vmul.f32 %v1412, 0.044715
    %v1423 = vmul.f32 %v1414, 0.044715
    %v1424 = vmul.f32 %v1420, %v1407
    %v1425 = vmul.f32 %v1421, %v1409
    %v1426 = vmul.f32 %v1422, %v1412
    %v1427 = vmul.f32 %v1423, %v1414
    %v1428 = vmul.f32 %v1424, %v1407
    %v1429 = vmul.f32 %v1425, %v1409
    %v1430 = vmul.f32 %v1426, %v1412
    %v1431 = vmul.f32 %v1427, %v1414
    %v1432 = vadd.f32 %v1407, %v1428
    %v1433 = vadd.f32 %v1409, %v1429
    %v1434 = vadd.f32 %v1412, %v1430
    %v1435 = vadd.f32 %v1414, %v1431
    %v1436 = vmul.f32 %v1432, 0.7978846
    %v1437 = vmul.f32 %v1433, 0.7978846
    %v1438 = vmul.f32 %v1434, 0.7978846
    %v1439 = vmul.f32 %v1435, 0.7978846
    %v1440 = vtanh.pop %v1436
    %v1441 = vtanh.pop %v1437
    %v1442 = vtanh.pop %v1438
    %v1443 = vtanh.pop %v1439
    %v1444 = vadd.f32 %v1440, 1.0
    %v1445 = vadd.f32 %v1441, 1.0
    %v1446 = vadd.f32 %v1442, 1.0
    %v1447 = vadd.f32 %v1443, 1.0
    %v1448 = vmul.f32 %v1416, %v1444
    %v1449 = vmul.f32 %v1417, %v1445
    %v1450 = vmul.f32 %v1418, %v1446
    %v1451 = vmul.f32 %v1419, %v1447
    %v1452 = vld [vmem:[%s16] sm:$0xf]
    %v1453 = vld [vmem:[%s16 + $0x4] sm:$0xf]
    %v1454 = vld [vmem:[%s16 + $0x8] sm:$0xf]
    %v1455 = vld [vmem:[%s16 + $0xc] sm:$0xf]
    %v1456 = vld [vmem:[%s16 + $0x10] sm:$0xf]
    %v1457 = vld [vmem:[%s16 + $0x14] sm:$0xf]
    %v1458 = vld [vmem:[%s16 + $0x18] sm:$0xf]
    %v1459 = vld [vmem:[%s16 + $0x1c] sm:$0xf]
    %v1460 = vld [vmem:[%s16 + $0x20] sm:$0xf]
    %v1461 = vld [vmem:[%s16 + $0x24] sm:$0xf]
    %v1462 = vld [vmem:[%s16 + $0x28] sm:$0xf]
    %v1463 = vld [vmem:[%s16 + $0x2c] sm:$0xf]
    %v1464 = vld [vmem:[%s16 + $0x30] sm:$0xf]
    %v1465 = vld [vmem:[%s16 + $0x34] sm:$0xf]
    %v1466 = vld [vmem:[%s16 + $0x38] sm:$0xf]
    %v1467 = vld [vmem:[%s16 + $0x3c] sm:$0xf]
    %v1468 = vpack.c.bf16 %v1449, %v1448
    %v1469 = vpack.c.bf16 %v1451, %v1450
    %v1486 = vunpack.c.l.b16 %v1452
    %v1487 = vunpack.c.l.b16 %v1453
    %v1488 = vunpack.c.l.b16 %v1454
    %v1489 = vunpack.c.l.b16 %v1455
    %v1490 = vunpack.c.l.b16 %v1456
    %v1491 = vunpack.c.l.b16 %v1457
    %v1492 = vunpack.c.l.b16 %v1458
    %v1493 = vunpack.c.l.b16 %v1459
    %v1494 = vunpack.c.l.b16 %v1460
    %v1495 = vunpack.c.l.b16 %v1461
    %v1496 = vunpack.c.l.b16 %v1462
    %v1497 = vunpack.c.l.b16 %v1463
    %v1498 = vunpack.c.l.b16 %v1464
    %v1499 = vunpack.c.l.b16 %v1465
    %v1500 = vunpack.c.l.b16 %v1466
    %v1501 = vunpack.c.l.b16 %v1467
    %v1502 = vpack.c.b16 %v1487, %v1486
    %v1503 = vpack.c.b16 %v1489, %v1488
    %v1504 = vpack.c.b16 %v1491, %v1490
    %v1505 = vpack.c.b16 %v1493, %v1492
    %v1506 = vpack.c.b16 %v1495, %v1494
    %v1507 = vpack.c.b16 %v1497, %v1496
    %v1508 = vpack.c.b16 %v1499, %v1498
    %v1509 = vpack.c.b16 %v1501, %v1500
    %1518 = vmatpush.bf16.msra.mxu0 %v1509
    %1519 = vmatpush.bf16.msra.mxu0 %v1508
    %1520 = vmatpush.bf16.msra.mxu0 %v1507
    %1521 = vmatpush.bf16.msra.mxu0 %v1506
    %1522 = vmatpush.bf16.msra.mxu0 %v1505
    %1523 = vmatpush.bf16.msra.mxu0 %v1504
    %1524 = vmatpush.bf16.msra.mxu0 %v1503
    %1525 = vmatpush.bf16.msra.mxu0 %v1502
    %1526 = vmatmul.bf16.gmra.mxu0 %v1468
    %v1527 = vpop.f32.mrf.mxu0
    %v1528 = vadd.f32 0.0, %v1527
    %v1529 = vpop.f32.mrf.mxu0
    %v1530 = vadd.f32 0.0, %v1529
    %1531 = vmatmul.bf16.gmra.mxu0 %v1469
    %v1532 = vpop.f32.mrf.mxu0
    %v1533 = vadd.f32 0.0, %v1532
    %v1534 = vpop.f32.mrf.mxu0
    %v1535 = vadd.f32 0.0, %v1534
    %1536 = vdwg.mxu0
    %v1537 = vadd.f32 %v1261, %v1528
    %v1538 = vadd.f32 %v1262, %v1530
    %v1539 = vadd.f32 %v1263, %v1533
    %v1540 = vadd.f32 %v1264, %v1535
    %v1541 = vld [vmem:[%s17] sm:$0x1]
    %v1543 = vperm.slane %v1541, 0
    %v1545 = vadd.f32 %v1537, %v1543
    %v1546 = vadd.f32 %v1538, %v1543
    %v1547 = vadd.f32 %v1539, %v1543
    %v1548 = vadd.f32 %v1540, %v1543
    %v1549 = vld [vmem:[%s18] sm:$0x1]
    %v1550 = vld [vmem:[%s19] sm:$0x1]
    %v1551 = vsel %vm80, %v1545, 0.0
    %1552 = vadd.xlane.f32.xlu0 %v1551
    %v1553 = vpop.xlane.xlu0 %1552
    %v1554 = vsel %vm80, %v1546, 0.0
    %1555 = vadd.xlane.f32.xlu0 %v1554
    %v1556 = vpop.xlane.xlu0 %1555
    %v1557 = vsel %vm80, %v1547, 0.0
    %1558 = vadd.xlane.f32.xlu0 %v1557
    %v1559 = vpop.xlane.xlu0 %1558
    %v1560 = vsel %vm80, %v1548, 0.0
    %1561 = vadd.xlane.f32.xlu0 %v1560
    %v1562 = vpop.xlane.xlu0 %1561
    %v1563 = vmul.f32 %v1553, %v99
    %v1564 = vmul.f32 %v1556, %v99
    %v1565 = vmul.f32 %v1559, %v99
    %v1566 = vmul.f32 %v1562, %v99
    %v1567 = vsub.f32 %v1545, %v1563
    %v1568 = vsub.f32 %v1546, %v1564
    %v1569 = vsub.f32 %v1547, %v1565
    %v1570 = vsub.f32 %v1548, %v1566
    %v1571 = vmul.f32 %v1567, %v1567
    %v1572 = vmul.f32 %v1568, %v1568
    %v1573 = vmul.f32 %v1569, %v1569
    %v1574 = vmul.f32 %v1570, %v1570
    %v1575 = vsel %vm80, %v1571, 0.0
    %1576 = vadd.xlane.f32.xlu0 %v1575
    %v1577 = vpop.xlane.xlu0 %1576
    %v1578 = vsel %vm80, %v1572, 0.0
    %1579 = vadd.xlane.f32.xlu0 %v1578
    %v1580 = vpop.xlane.xlu0 %1579
    %v1581 = vsel %vm80, %v1573, 0.0
    %1582 = vadd.xlane.f32.xlu0 %v1581
    %v1583 = vpop.xlane.xlu0 %1582
    %v1584 = vsel %vm80, %v1574, 0.0
    %1585 = vadd.xlane.f32.xlu0 %v1584
    %v1586 = vpop.xlane.xlu0 %1585
    %v1587 = vmul.f32 %v1577, %v99
    %v1588 = vmul.f32 %v1580, %v99
    %v1589 = vmul.f32 %v1583, %v99
    %v1590 = vmul.f32 %v1586, %v99
    %v1591 = vadd.f32 %v1587, 1e-05
    %v1592 = vadd.f32 %v1588, 1e-05
    %v1593 = vadd.f32 %v1589, 1e-05
    %v1594 = vadd.f32 %v1590, 1e-05
    %v1595 = vrsqrt.pop %v1591
    %v1596 = vmul.f32 %v1595, %v1591
    %v1597 = vmul.f32 %v1596, %v1595
    %v1598 = vmul.f32 0.5, %v1597
    %v1599 = vsub.f32 1.5, %v1598
    %v1600 = vmul.f32 %v1595, %v1599
    %vm1601 = vweird.f32 %v1591
    %vm1602 = vweird.f32 %v1595
    %vm1603 = vmor %vm1601, %vm1602
    %v1604 = vsel %vm1603, %v1595, %v1600
    %v1605 = vrsqrt.pop %v1592
    %v1606 = vmul.f32 %v1605, %v1592
    %v1607 = vmul.f32 %v1606, %v1605
    %v1608 = vmul.f32 0.5, %v1607
    %v1609 = vsub.f32 1.5, %v1608
    %v1610 = vmul.f32 %v1605, %v1609
    %vm1611 = vweird.f32 %v1592
    %vm1612 = vweird.f32 %v1605
    %vm1613 = vmor %vm1611, %vm1612
    %v1614 = vsel %vm1613, %v1605, %v1610
    %v1615 = vrsqrt.pop %v1593
    %v1616 = vmul.f32 %v1615, %v1593
    %v1617 = vmul.f32 %v1616, %v1615
    %v1618 = vmul.f32 0.5, %v1617
    %v1619 = vsub.f32 1.5, %v1618
    %v1620 = vmul.f32 %v1615, %v1619
    %vm1621 = vweird.f32 %v1593
    %vm1622 = vweird.f32 %v1615
    %vm1623 = vmor %vm1621, %vm1622
    %v1624 = vsel %vm1623, %v1615, %v1620
    %v1625 = vrsqrt.pop %v1594
    %v1626 = vmul.f32 %v1625, %v1594
    %v1627 = vmul.f32 %v1626, %v1625
    %v1628 = vmul.f32 0.5, %v1627
    %v1629 = vsub.f32 1.5, %v1628
    %v1630 = vmul.f32 %v1625, %v1629
    %vm1631 = vweird.f32 %v1594
    %vm1632 = vweird.f32 %v1625
    %vm1633 = vmor %vm1631, %vm1632
    %v1634 = vsel %vm1633, %v1625, %v1630
    %v1635 = vmul.f32 %v1567, %v1604
    %v1636 = vmul.f32 %v1568, %v1614
    %v1637 = vmul.f32 %v1569, %v1624
    %v1638 = vmul.f32 %v1570, %v1634
    %v1640 = vperm.slane %v1549, 0
    %v1642 = vmul.f32 %v1635, %v1640
    %v1643 = vmul.f32 %v1636, %v1640
    %v1644 = vmul.f32 %v1637, %v1640
    %v1645 = vmul.f32 %v1638, %v1640
    %v1647 = vperm.slane %v1550, 0
    %v1649 = vadd.f32 %v1642, %v1647
    %v1650 = vadd.f32 %v1643, %v1647
    %v1651 = vadd.f32 %v1644, %v1647
    %v1652 = vadd.f32 %v1645, %v1647
    %v1653 = vld [vmem:[%s20] sm:$0xf]
    %v1654 = vld [vmem:[%s20 + $0x4] sm:$0xf]
    %v1655 = vld [vmem:[%s20 + $0x8] sm:$0xf]
    %v1656 = vld [vmem:[%s20 + $0xc] sm:$0xf]
    %v1657 = vpack.c.bf16 %v1650, %v1649
    %v1658 = vpack.c.bf16 %v1652, %v1651
    %v1663 = vunpack.c.l.b16 %v1653
    %v1664 = vunpack.c.l.b16 %v1654
    %v1665 = vunpack.c.l.b16 %v1655
    %v1666 = vunpack.c.l.b16 %v1656
    %v1667 = vpack.c.b16 %v1664, %v1663
    %v1668 = vpack.c.b16 %v1666, %v1665
    %v1672 = vsel %vm80, %v1657, 0
    %v1675 = vsel %vm80, %v1658, 0
    %1677 = vmatpush.bf16.msra.mxu0 0
    %1678 = vmatpush.bf16.msra.mxu0 0
    %1679 = vmatpush.bf16.msra.mxu0 0
    %1680 = vmatpush.bf16.msra.mxu0 0
    %1681 = vmatpush.bf16.msra.mxu0 0
    %1682 = vmatpush.bf16.msra.mxu0 0
    %1683 = vmatpush.bf16.msra.mxu0 %v1668
    %1684 = vmatpush.bf16.msra.mxu0 %v1667
    %1685 = vmatmul.bf16.gmra.mxu0 %v1672
    %v1686 = vpop.f32.mrf.mxu0
    %v1687 = vadd.f32 0.0, %v1686
    %v1688 = vpop.f32.mrf.mxu0
    %v1689 = vadd.f32 0.0, %v1688
    %1690 = vmatmul.bf16.gmra.mxu0 %v1675
    %v1691 = vpop.f32.mrf.mxu0
    %v1692 = vadd.f32 0.0, %v1691
    %v1693 = vpop.f32.mrf.mxu0
    %v1694 = vadd.f32 0.0, %v1693
    %1695 = vdwg.mxu0
    %1696 = vst [vmem:[#allocation2] sm:$0xff] %v1687
    %1697 = vst [vmem:[#allocation2 + $0x8] sm:$0xff] %v1689
    %1698 = vst [vmem:[#allocation2 + $0x10] sm:$0xff] %v1692
    %1699 = vst [vmem:[#allocation2 + $0x18] sm:$0xff] %v1694
    // Predicated region
    $region86: #{incremental_gpt_forward.1} parent=1 // pred_check
      _
    $region87: #{incremental_gpt_forward.1} parent=1 // pred_check_branch
      %1701 = sbr.rel (0) target = $region89
    $region88: #{incremental_gpt_forward.1} parent=1 // pred_region
      %1703 = vsyncadd [#allocation3], 0
      %s1704 = sshll.u32 [#allocation2], 4
      %s1705 = int_to_ptr.vmem [resolvable:$true] %s1704
      %s1706 = sshll.u32 %s21, 4
      %s1707 = int_to_ptr.hbm [resolvable:$true] %s1706
      %1712 = dma.vmem_to_hbm [thread:$0]  %s1705, 512, %s1707, [#allocation3], 128, 128, 8
    $region89: #{incremental_gpt_forward.1} parent=1 // pred_fallthru
      _
    // Predicated region
    $region90: #{incremental_gpt_forward.1} parent=1 // pred_check
      _
    $region91: #{incremental_gpt_forward.1} parent=1 // pred_check_branch
      %1714 = sbr.rel (0) target = $region93
    $region92: #{incremental_gpt_forward.1} parent=1 // pred_region
      %1716 = dma.done [#allocation3], 512
    $region93: #{incremental_gpt_forward.1} parent=1 // pred_fallthru
      _
    %1717 = vsyncpa [#allocation3], 1

</llo_original>
